<compile_context>
chip_gen: v7x
topology: tpu7x:2x2x1
jax: 0.10.0
libtpu: 0.0.40
codegen_flags: <defaults>
</compile_context>

<pallas_src>
import jax
import jax.numpy as jnp
from jax.experimental import pallas as pl
from jax.experimental.pallas import tpu as pltpu

EPS = 1e-5  # torch.nn.LayerNorm default eps


def _round_up(n, m):
    return ((n + m - 1) // m) * m


def _vmem_capacity_bytes():
    try:
        info = pltpu.get_tpu_info()
        return int(getattr(info, "vmem_capacity_bytes", 64 << 20))
    except Exception:
        return 64 << 20  # conservative (v7x-sized) fallback


def _pick_block_b(b, per_row_bytes, vmem_cap):
    """Largest bb that fits a VMEM budget, capped so the grid has >=4 steps
    (when the batch allows) for input-DMA pipelining / megacore sharding."""
    budget = vmem_cap // 3  # headroom: double-buffered inputs + params + spills
    bb = max(1, min(b, budget // max(per_row_bytes, 1)))
    bb = min(bb, max(1, b // 4))
    while b % bb:
        bb -= 1
    return bb


def _make_kernel(k, pad2, t_real, halo_l, halo_r, t_ext, fuse1, fuse2, matmul_dtype):
    """Kernel closure over static ints / flags."""

    def kernel(x_ref, keep_ref,
               w1_ref, b1_ref, g1_ref, be1_ref,
               w2_ref, b2_ref, gwl_ref, c_ref,
               out_ref):
        bb, _, e = x_ref.shape
        t_pad = out_ref.shape[-1]           # padded (multiple-of-128) output length
        f = w1_ref.shape[-1]
        inv_f = 1.0 / f

        # Hoist small parameter reads/broadcasts once per grid step.
        b1 = b1_ref[...]; g1 = g1_ref[...]; be1 = be1_ref[...]
        b2 = b2_ref[...]
        gwl = gwl_ref[...]                              # (1, F) = gamma2 * w_linear
        sgwl = jnp.sum(gwl, keepdims=True)              # (1, 1)
        c0 = c_ref[...]                                 # (1, 1) = sum(beta2*wl) + bl

        # ---- in-kernel zero halo (no wrapper-side HBM round trip) -------------
        x = x_ref[...].astype(jnp.float32)              # (bb, T, E)
        xp = jnp.concatenate(
            [jnp.zeros((bb, halo_l, e), jnp.float32), x,
             jnp.zeros((bb, halo_r, e), jnp.float32)], axis=1)   # (bb, t_ext+k-1, E)
        xpm = xp.astype(matmul_dtype)

        # ---- conv1: K static taps, fused matmul (tiny channels) or per-tap ----
        taps1 = [xpm[:, j:j + t_ext, :] for j in range(k)]
        if fuse1:
            p1 = jnp.concatenate(taps1, axis=-1).reshape(bb * t_ext, k * e)
            h = jnp.dot(p1, w1_ref[...], preferred_element_type=jnp.float32)
        else:
            h = jnp.dot(taps1[0].reshape(bb * t_ext, e), w1_ref[0:e, :],
                        preferred_element_type=jnp.float32)
            for j in range(1, k):
                h = h + jnp.dot(taps1[j].reshape(bb * t_ext, e),
                                w1_ref[j * e:(j + 1) * e, :],
                                preferred_element_type=jnp.float32)
        h = jnp.maximum(h + b1, 0.0)

        # LayerNorm 1 (one-pass statistics), f32.
        mu = jnp.mean(h, axis=-1, keepdims=True)
        var = jnp.mean(h * h, axis=-1, keepdims=True) - mu * mu
        h = (h - mu) * jax.lax.rsqrt(var + EPS) * g1 + be1
        # dropout_1: identity at inference

        # Zero the rows acting as conv2's zero padding (and alignment padding):
        # one tiny (1, t_ext, 1) keep vector, one broadcast multiply.
        h3 = h.reshape(bb, t_ext, f)
        s = jax.lax.broadcasted_iota(jnp.int32, (1, t_ext, 1), 1)
        tkeep = ((s >= pad2) & (s < pad2 + t_real)).astype(jnp.float32)
        h3 = h3 * tkeep
        h3m = h3.astype(matmul_dtype)

        # ---- conv2 (module hard-codes padding=1): same tap structure ----------
        taps2 = [h3m[:, j:j + t_pad, :] for j in range(k)]
        if fuse2:
            p2 = jnp.concatenate(taps2, axis=-1).reshape(bb * t_pad, k * f)
            h2 = jnp.dot(p2, w2_ref[...], preferred_element_type=jnp.float32)
        else:
            h2 = jnp.dot(taps2[0].reshape(bb * t_pad, f), w2_ref[0:f, :],
                         preferred_element_type=jnp.float32)
            for j in range(1, k):
                h2 = h2 + jnp.dot(taps2[j].reshape(bb * t_pad, f),
                                  w2_ref[j * f:(j + 1) * f, :],
                                  preferred_element_type=jnp.float32)
        h2 = jnp.maximum(h2 + b2, 0.0).reshape(bb, 1, t_pad, f)
        # dropout_2: identity at inference

        # ---- folded LayerNorm2-affine + Linear(F,1): three lane reductions ----
        s1 = jnp.sum(h2, axis=-1)                                   # (bb, 1, T_pad)
        s2 = jnp.sum(h2 * h2, axis=-1)
        sw = jnp.sum(h2 * gwl.reshape(1, 1, 1, f), axis=-1)
        mu2 = s1 * inv_f
        var2 = s2 * inv_f - mu2 * mu2
        lin = jax.lax.rsqrt(var2 + EPS) * (sw - mu2 * sgwl) + c0    # (bb, 1, T_pad)

        out_ref[...] = (lin * keep_ref[...]).astype(out_ref.dtype)  # lane-dense

    return kernel


def variance_predictor(x, mask, params, *, block_b=None, matmul_dtype=jnp.bfloat16):
    """x: (B, T, E) float, mask: (B, T) bool (True = zero out). Returns (B, T) f32."""
    b, t, e = x.shape
    assert mask.shape == (b, t)
    k, e_in, f = params["w1"].shape
    assert e_in == e
    assert k == 3, "conv2 pad is hard-coded to 1 in the module; only K==3 is shape-consistent"
    pad1 = (k - 1) // 2
    pad2 = 1

    # Lane-dense output length; extended conv1-output length (8-aligned for the
    # in-kernel sublane merges); halo handled inside the kernel with zeros.
    t_pad = _round_up(t, 128)
    t_ext = _round_up(t_pad + 2 * pad2, 8)
    halo_l = pad1 + pad2
    halo_r = (t_ext + (k - 1)) - halo_l - t
    assert halo_r >= 0

    # Fused K*Cin matmul only for tiny channels; per-tap accumulation otherwise.
    fuse1 = (k * e <= 256)
    fuse2 = (k * f <= 256)

    # Weights: (K, Cin, Cout) -> (K*Cin, Cout); MXU operands pre-cast.
    w1f = params["w1"].reshape(k * e, f).astype(matmul_dtype)
    w2f = params["w2"].reshape(k * f, f).astype(matmul_dtype)
    # Fold LN2 affine + Linear(F, 1): gwl = g2*wl, c = sum(be2*wl) + bl.
    wl = params["wl"].reshape(f)
    gwl = (params["g2"].reshape(f) * wl).reshape(1, f).astype(jnp.float32)
    cconst = (jnp.sum(params["be2"].reshape(f) * wl)
              + params["bl"].reshape(())).reshape(1, 1).astype(jnp.float32)

    # Keep-mask, lane-dense, shaped (B, 1, T_pad) so block last-two dims always
    # equal the full array dims regardless of bb.
    keep = jnp.pad(1.0 - mask.astype(jnp.float32),
                   ((0, 0), (0, t_pad - t))).reshape(b, 1, t_pad)

    # Generation-aware VMEM sizing.
    vmem_cap = _vmem_capacity_bytes()
    md_b = jnp.dtype(matmul_dtype).itemsize
    per_row = ((t_ext + k - 1) * e * (4 + md_b)                      # xp f32 + cast
               + t_ext * (k * e if fuse1 else e) * md_b              # conv1 LHS
               + 2 * t_ext * f * 4                                   # h1, h3 (f32)
               + t_pad * (k * f if fuse2 else f) * md_b              # conv2 LHS
               + t_pad * f * 4 + 8 * t_pad * 4)                      # h2 + reductions
    bb = block_b if block_b is not None else _pick_block_b(b, per_row, vmem_cap)
    assert b % bb == 0
    vmem_limit = min(int(vmem_cap * 3 // 4), 112 << 20)

    kernel = _make_kernel(k, pad2, t, halo_l, halo_r, t_ext, fuse1, fuse2, matmul_dtype)

    def inv(shape):  # grid-invariant full-block spec
        n = len(shape)
        return pl.BlockSpec(shape, lambda i, n=n: (0,) * n)

    grid_spec = pltpu.PrefetchScalarGridSpec(
        num_scalar_prefetch=0,
        grid=(b // bb,),
        in_specs=[
            pl.BlockSpec((bb, t, e), lambda i: (i, 0, 0)),        # x (native dtype)
            pl.BlockSpec((bb, 1, t_pad), lambda i: (i, 0, 0)),    # keep (lane-dense)
            inv((k * e, f)), inv((1, f)), inv((1, f)), inv((1, f)),
            inv((k * f, f)), inv((1, f)),
            inv((1, f)), inv((1, 1)),
        ],
        out_specs=pl.BlockSpec((bb, 1, t_pad), lambda i: (i, 0, 0)),
    )
    out = pl.pallas_call(
        kernel,
        out_shape=jax.ShapeDtypeStruct((b, 1, t_pad), jnp.float32),
        grid_spec=grid_spec,
        compiler_params=pltpu.CompilerParams(
            dimension_semantics=("parallel",),
            vmem_limit_bytes=vmem_limit),
    )(x, keep,
      w1f, params["b1"], params["g1"], params["be1"],
      w2f, params["b2"], gwl, cconst)
    return out[:, 0, :t]


def init_params(key, input_size, filter_size, kernel_size):
    """Deterministic synthetic parameters (xavier-ish scaling).
    Conv weights stored as (K, Cin, Cout): w_jax[k, cin, cout] = w_torch[cout, cin, k]."""
    ks = jax.random.split(key, 4)
    s1 = (2.0 / (input_size + filter_size)) ** 0.5
    s2 = (2.0 / (2 * filter_size)) ** 0.5
    sl = (2.0 / (filter_size + 1)) ** 0.5
    return {
        "w1": jax.random.normal(ks[0], (kernel_size, input_size, filter_size),
                                jnp.float32) * s1,
        "b1": jnp.full((1, filter_size), 0.01, jnp.float32),
        "g1": jnp.ones((1, filter_size), jnp.float32),
        "be1": jnp.zeros((1, filter_size), jnp.float32),
        "w2": jax.random.normal(ks[1], (kernel_size, filter_size, filter_size),
                                jnp.float32) * s2,
        "b2": jnp.full((1, filter_size), -0.01, jnp.float32),
        "g2": jnp.ones((1, filter_size), jnp.float32),
        "be2": jnp.zeros((1, filter_size), jnp.float32),
        "wl": jax.random.normal(ks[2], (filter_size, 1), jnp.float32) * sl,
        "bl": jnp.full((1, 1), 0.05, jnp.float32),
    }


def reference(x, mask, p):
    """Pure-JAX reference matching the PyTorch forward (inference mode)."""
    k = p["w1"].shape[0]

    def conv(h, w, bias, pad):
        t = h.shape[1]
        hp = jnp.pad(h, ((0, 0), (pad, pad), (0, 0)))
        acc = jnp.zeros(h.shape[:2] + (w.shape[2],), jnp.float32)
        for j in range(k):
            acc = acc + jnp.einsum("btc,cf->btf", hp[:, j:j + t], w[j])
        return acc + bias

    def ln(h, g, be):
        mu = h.mean(-1, keepdims=True)
        var = ((h - mu) ** 2).mean(-1, keepdims=True)
        return (h - mu) / jnp.sqrt(var + EPS) * g + be

    h = conv(x, p["w1"], p["b1"][0], (k - 1) // 2)
    h = jnp.maximum(h, 0.0)
    h = ln(h, p["g1"][0], p["be1"][0])
    h = conv(h, p["w2"], p["b2"][0], 1)
    h = jnp.maximum(h, 0.0)
    h = ln(h, p["g2"][0], p["be2"][0])
    out = (h @ p["wl"] + p["bl"][0])[..., 0]
    return jnp.where(mask, 0.0, out)


if __name__ == "__main__":
    key = jax.random.PRNGKey(0)
    kA, kB = jax.random.split(key)

    # --- Test A: tiny channels (fused-patch path), f32 MXU -> tight check ------
    B, T, E, F, K = 2, 16, 32, 32, 3
    kx, km, kp = jax.random.split(kA, 3)
    x = jax.random.normal(kx, (B, T, E), jnp.float32)
    mask = jax.random.bernoulli(km, 0.3, (B, T))
    params = init_params(kp, E, F, K)
    out = jax.block_until_ready(
        variance_predictor(x, mask, params, matmul_dtype=jnp.float32))
    ref = reference(x, mask, params)
    assert out.shape == (B, T)
    assert jnp.allclose(out, ref, atol=1e-4, rtol=1e-3), "fused f32 path mismatch"

    # --- Test B: larger channels (per-tap path) ---------------------------------
    B2, T2, E2, F2 = 2, 24, 128, 128
    kx2, km2, kp2 = jax.random.split(kB, 3)
    x2 = jax.random.normal(kx2, (B2, T2, E2), jnp.float32)
    mask2 = jax.random.bernoulli(km2, 0.3, (B2, T2))
    params2 = init_params(kp2, E2, F2, K)

    ref2 = reference(x2, mask2, params2)

    # B1: per-tap path with f32 MXU operands -> tight check.
    out2_f32 = jax.block_until_ready(
        variance_predictor(x2, mask2, params2, matmul_dtype=jnp.float32))
    assert out2_f32.shape == (B2, T2)
    assert jnp.allclose(out2_f32, ref2, atol=1e-3, rtol=1e-3), "per-tap f32 path mismatch"

    # B2: default production path (bf16 MXU operands) -> loose check.
    out2_bf16 = jax.block_until_ready(variance_predictor(x2, mask2, params2))
    assert out2_bf16.shape == (B2, T2)
    assert jnp.allclose(out2_bf16, ref2, atol=1e-1, rtol=1e-1), "per-tap bf16 path mismatch"

    print("KERNEL_OK")
</pallas_src>

<mosaic_0001>
module attributes {stable_mosaic.version = 11 : i64} {
  func.func @kernel(%arg0: i32, %arg1: memref<1x16x32xf32, #tpu.memory_space<vmem>>, %arg2: memref<1x1x128xf32, #tpu.memory_space<vmem>>, %arg3: memref<96x32xf32, #tpu.memory_space<vmem>>, %arg4: memref<1x32xf32, #tpu.memory_space<vmem>>, %arg5: memref<1x32xf32, #tpu.memory_space<vmem>>, %arg6: memref<1x32xf32, #tpu.memory_space<vmem>>, %arg7: memref<96x32xf32, #tpu.memory_space<vmem>>, %arg8: memref<1x32xf32, #tpu.memory_space<vmem>>, %arg9: memref<1x32xf32, #tpu.memory_space<vmem>>, %arg10: memref<1x1xf32, #tpu.memory_space<vmem>>, %arg11: memref<1x1x128xf32, #tpu.memory_space<vmem>>) attributes {dimension_semantics = [#tpu.dimension_semantics<parallel>], iteration_bounds = array<i64: 2>, scalar_prefetch = 0 : i64, scratch_operands = 0 : i64, tpu.core_type = #tpu.core_type<tc>, window_params = [{transform_indices = @transform_0, window_bounds = array<i64: 1, 16, 32>}, {transform_indices = @transform_1, window_bounds = array<i64: 1, 1, 128>}, {pipeline_mode = #tpu.pipeline_mode<synchronous>, transform_indices = @transform_2, window_bounds = array<i64: 96, 32>}, {pipeline_mode = #tpu.pipeline_mode<synchronous>, transform_indices = @transform_3, window_bounds = array<i64: 1, 32>}, {pipeline_mode = #tpu.pipeline_mode<synchronous>, transform_indices = @transform_4, window_bounds = array<i64: 1, 32>}, {pipeline_mode = #tpu.pipeline_mode<synchronous>, transform_indices = @transform_5, window_bounds = array<i64: 1, 32>}, {pipeline_mode = #tpu.pipeline_mode<synchronous>, transform_indices = @transform_6, window_bounds = array<i64: 96, 32>}, {pipeline_mode = #tpu.pipeline_mode<synchronous>, transform_indices = @transform_7, window_bounds = array<i64: 1, 32>}, {pipeline_mode = #tpu.pipeline_mode<synchronous>, transform_indices = @transform_8, window_bounds = array<i64: 1, 32>}, {pipeline_mode = #tpu.pipeline_mode<synchronous>, transform_indices = @transform_9, window_bounds = array<i64: 1, 1>}, {transform_indices = @transform_10, window_bounds = array<i64: 1, 1, 128>}]} {
    %c0 = arith.constant 0 : index
    %c0_0 = arith.constant 0 : index
    %0 = vector.load %arg4[%c0, %c0_0] : memref<1x32xf32, #tpu.memory_space<vmem>>, vector<1x32xf32>
    %c0_1 = arith.constant 0 : index
    %c0_2 = arith.constant 0 : index
    %1 = vector.load %arg5[%c0_1, %c0_2] : memref<1x32xf32, #tpu.memory_space<vmem>>, vector<1x32xf32>
    %c0_3 = arith.constant 0 : index
    %c0_4 = arith.constant 0 : index
    %2 = vector.load %arg6[%c0_3, %c0_4] : memref<1x32xf32, #tpu.memory_space<vmem>>, vector<1x32xf32>
    %c0_5 = arith.constant 0 : index
    %c0_6 = arith.constant 0 : index
    %3 = vector.load %arg8[%c0_5, %c0_6] : memref<1x32xf32, #tpu.memory_space<vmem>>, vector<1x32xf32>
    %c0_7 = arith.constant 0 : index
    %c0_8 = arith.constant 0 : index
    %4 = vector.load %arg9[%c0_7, %c0_8] : memref<1x32xf32, #tpu.memory_space<vmem>>, vector<1x32xf32>
    %5 = vector.shape_cast %4 : vector<1x32xf32> to vector<1x1x32xf32>
    %cst = arith.constant dense<0.000000e+00> : vector<1xf32>
    %6 = vector.multi_reduction <add>, %5, %cst [1, 2] : vector<1x1x32xf32> to vector<1xf32>
    %7 = vector.shape_cast %6 : vector<1xf32> to vector<1x1x1xf32>
    %8 = vector.extract %7[0, 0, 0] : f32 from vector<1x1x1xf32>
    %9 = vector.broadcast %8 : f32 to vector<1x1xf32>
    %c0_9 = arith.constant 0 : index
    %c0_10 = arith.constant 0 : index
    %10 = vector.load %arg10[%c0_9, %c0_10] : memref<1x1xf32, #tpu.memory_space<vmem>>, vector<1x1xf32>
    %c0_11 = arith.constant 0 : index
    %c0_12 = arith.constant 0 : index
    %c0_13 = arith.constant 0 : index
    %11 = vector.load %arg1[%c0_11, %c0_12, %c0_13] : memref<1x16x32xf32, #tpu.memory_space<vmem>>, vector<1x16x32xf32>
    %cst_14 = arith.constant 0.000000e+00 : f32
    %12 = vector.broadcast %cst_14 : f32 to vector<1x2x32xf32>
    %cst_15 = arith.constant 0.000000e+00 : f32
    %13 = vector.broadcast %cst_15 : f32 to vector<1x120x32xf32>
    %14 = tpu.concatenate %12, %11, %13 in 1 : vector<1x2x32xf32>, vector<1x16x32xf32>, vector<1x120x32xf32> -> vector<1x138x32xf32>
    %15 = vector.extract_strided_slice %14 {offsets = [0, 0, 0], sizes = [1, 136, 32], strides = [1, 1, 1]} : vector<1x138x32xf32> to vector<1x136x32xf32>
    %16 = vector.extract_strided_slice %14 {offsets = [0, 1, 0], sizes = [1, 136, 32], strides = [1, 1, 1]} : vector<1x138x32xf32> to vector<1x136x32xf32>
    %17 = vector.extract_strided_slice %14 {offsets = [0, 2, 0], sizes = [1, 136, 32], strides = [1, 1, 1]} : vector<1x138x32xf32> to vector<1x136x32xf32>
    %18 = tpu.concatenate %15, %16, %17 in 2 : vector<1x136x32xf32>, vector<1x136x32xf32>, vector<1x136x32xf32> -> vector<1x136x96xf32>
    %19 = vector.shape_cast %18 : vector<1x136x96xf32> to vector<136x96xf32>
    %c0_16 = arith.constant 0 : index
    %c0_17 = arith.constant 0 : index
    %20 = vector.load %arg3[%c0_16, %c0_17] : memref<96x32xf32, #tpu.memory_space<vmem>>, vector<96x32xf32>
    %cst_18 = arith.constant dense<0.000000e+00> : vector<136x32xf32>
    %21 = tpu.matmul %19, %20, %cst_18 {dimension_numbers = #tpu.dot_dimension_numbers<[1], [0], [0], [1], [0, 0, 1, 1], [], []>} : vector<136x96xf32>, vector<96x32xf32>, vector<136x32xf32> -> vector<136x32xf32>
    %22 = vector.broadcast %0 : vector<1x32xf32> to vector<136x32xf32>
    %23 = arith.addf %21, %22 : vector<136x32xf32>
    %cst_19 = arith.constant 0.000000e+00 : f32
    %24 = vector.broadcast %cst_19 : f32 to vector<136x32xf32>
    %25 = arith.maximumf %23, %24 : vector<136x32xf32>
    %cst_20 = arith.constant dense<0.000000e+00> : vector<136xf32>
    %26 = vector.multi_reduction <add>, %25, %cst_20 [1] : vector<136x32xf32> to vector<136xf32>
    %27 = vector.shape_cast %26 : vector<136xf32> to vector<136x1xf32>
    %cst_21 = arith.constant 3.200000e+01 : f32
    %28 = vector.broadcast %cst_21 : f32 to vector<136x1xf32>
    %29 = arith.divf %27, %28 : vector<136x1xf32>
    %30 = arith.mulf %25, %25 : vector<136x32xf32>
    %cst_22 = arith.constant dense<0.000000e+00> : vector<136xf32>
    %31 = vector.multi_reduction <add>, %30, %cst_22 [1] : vector<136x32xf32> to vector<136xf32>
    %32 = vector.shape_cast %31 : vector<136xf32> to vector<136x1xf32>
    %cst_23 = arith.constant 3.200000e+01 : f32
    %33 = vector.broadcast %cst_23 : f32 to vector<136x1xf32>
    %34 = arith.divf %32, %33 : vector<136x1xf32>
    %35 = arith.mulf %29, %29 : vector<136x1xf32>
    %36 = arith.subf %34, %35 : vector<136x1xf32>
    %37 = vector.broadcast %29 : vector<136x1xf32> to vector<136x32xf32>
    %38 = arith.subf %25, %37 : vector<136x32xf32>
    %cst_24 = arith.constant 9.99999974E-6 : f32
    %39 = vector.broadcast %cst_24 : f32 to vector<136x1xf32>
    %40 = arith.addf %36, %39 : vector<136x1xf32>
    %41 = math.rsqrt %40 : vector<136x1xf32>
    %42 = vector.broadcast %41 : vector<136x1xf32> to vector<136x32xf32>
    %43 = arith.mulf %38, %42 : vector<136x32xf32>
    %44 = vector.broadcast %1 : vector<1x32xf32> to vector<136x32xf32>
    %45 = arith.mulf %43, %44 : vector<136x32xf32>
    %46 = vector.broadcast %2 : vector<1x32xf32> to vector<136x32xf32>
    %47 = arith.addf %45, %46 : vector<136x32xf32>
    %48 = vector.shape_cast %47 : vector<136x32xf32> to vector<1x136x32xf32>
    %49 = tpu.iota {dimensions = array<i32: 1>} : vector<1x136x1xi32>
    %c1_i32 = arith.constant 1 : i32
    %50 = vector.broadcast %c1_i32 : i32 to vector<1x136x1xi32>
    %51 = arith.cmpi sge, %49, %50 : vector<1x136x1xi32>
    %c17_i32 = arith.constant 17 : i32
    %52 = vector.broadcast %c17_i32 : i32 to vector<1x136x1xi32>
    %53 = arith.cmpi slt, %49, %52 : vector<1x136x1xi32>
    %54 = arith.andi %51, %53 : vector<1x136x1xi1>
    %55 = arith.extui %54 : vector<1x136x1xi1> to vector<1x136x1xi32>
    %56 = arith.sitofp %55 : vector<1x136x1xi32> to vector<1x136x1xf32>
    %57 = vector.broadcast %56 : vector<1x136x1xf32> to vector<1x136x32xf32>
    %58 = arith.mulf %48, %57 : vector<1x136x32xf32>
    %59 = vector.extract_strided_slice %58 {offsets = [0, 0, 0], sizes = [1, 128, 32], strides = [1, 1, 1]} : vector<1x136x32xf32> to vector<1x128x32xf32>
    %60 = vector.extract_strided_slice %58 {offsets = [0, 1, 0], sizes = [1, 128, 32], strides = [1, 1, 1]} : vector<1x136x32xf32> to vector<1x128x32xf32>
    %61 = vector.extract_strided_slice %58 {offsets = [0, 2, 0], sizes = [1, 128, 32], strides = [1, 1, 1]} : vector<1x136x32xf32> to vector<1x128x32xf32>
    %62 = tpu.concatenate %59, %60, %61 in 2 : vector<1x128x32xf32>, vector<1x128x32xf32>, vector<1x128x32xf32> -> vector<1x128x96xf32>
    %63 = vector.shape_cast %62 : vector<1x128x96xf32> to vector<128x96xf32>
    %c0_25 = arith.constant 0 : index
    %c0_26 = arith.constant 0 : index
    %64 = vector.load %arg7[%c0_25, %c0_26] : memref<96x32xf32, #tpu.memory_space<vmem>>, vector<96x32xf32>
    %cst_27 = arith.constant dense<0.000000e+00> : vector<128x32xf32>
    %65 = tpu.matmul %63, %64, %cst_27 {dimension_numbers = #tpu.dot_dimension_numbers<[1], [0], [0], [1], [0, 0, 1, 1], [], []>} : vector<128x96xf32>, vector<96x32xf32>, vector<128x32xf32> -> vector<128x32xf32>
    %66 = vector.broadcast %3 : vector<1x32xf32> to vector<128x32xf32>
    %67 = arith.addf %65, %66 : vector<128x32xf32>
    %cst_28 = arith.constant 0.000000e+00 : f32
    %68 = vector.broadcast %cst_28 : f32 to vector<128x32xf32>
    %69 = arith.maximumf %67, %68 : vector<128x32xf32>
    %70 = vector.shape_cast %69 : vector<128x32xf32> to vector<1x1x128x32xf32>
    %cst_29 = arith.constant dense<0.000000e+00> : vector<1x1x128xf32>
    %71 = vector.multi_reduction <add>, %70, %cst_29 [3] : vector<1x1x128x32xf32> to vector<1x1x128xf32>
    %72 = arith.mulf %70, %70 : vector<1x1x128x32xf32>
    %cst_30 = arith.constant dense<0.000000e+00> : vector<1x1x128xf32>
    %73 = vector.multi_reduction <add>, %72, %cst_30 [3] : vector<1x1x128x32xf32> to vector<1x1x128xf32>
    %74 = vector.shape_cast %4 : vector<1x32xf32> to vector<1x1x1x32xf32>
    %75 = vector.broadcast %74 : vector<1x1x1x32xf32> to vector<1x1x128x32xf32>
    %76 = arith.mulf %70, %75 : vector<1x1x128x32xf32>
    %cst_31 = arith.constant dense<0.000000e+00> : vector<1x1x128xf32>
    %77 = vector.multi_reduction <add>, %76, %cst_31 [3] : vector<1x1x128x32xf32> to vector<1x1x128xf32>
    %cst_32 = arith.constant 3.125000e-02 : f32
    %78 = vector.broadcast %cst_32 : f32 to vector<1x1x128xf32>
    %79 = arith.mulf %71, %78 : vector<1x1x128xf32>
    %cst_33 = arith.constant 3.125000e-02 : f32
    %80 = vector.broadcast %cst_33 : f32 to vector<1x1x128xf32>
    %81 = arith.mulf %73, %80 : vector<1x1x128xf32>
    %82 = arith.mulf %79, %79 : vector<1x1x128xf32>
    %83 = arith.subf %81, %82 : vector<1x1x128xf32>
    %cst_34 = arith.constant 9.99999974E-6 : f32
    %84 = vector.broadcast %cst_34 : f32 to vector<1x1x128xf32>
    %85 = arith.addf %83, %84 : vector<1x1x128xf32>
    %86 = math.rsqrt %85 : vector<1x1x128xf32>
    %87 = vector.shape_cast %9 : vector<1x1xf32> to vector<1x1x1xf32>
    %88 = vector.broadcast %87 : vector<1x1x1xf32> to vector<1x1x128xf32>
    %89 = arith.mulf %79, %88 : vector<1x1x128xf32>
    %90 = arith.subf %77, %89 : vector<1x1x128xf32>
    %91 = arith.mulf %86, %90 : vector<1x1x128xf32>
    %92 = vector.shape_cast %10 : vector<1x1xf32> to vector<1x1x1xf32>
    %93 = vector.broadcast %92 : vector<1x1x1xf32> to vector<1x1x128xf32>
    %94 = arith.addf %91, %93 : vector<1x1x128xf32>
    %c0_35 = arith.constant 0 : index
    %c0_36 = arith.constant 0 : index
    %c0_37 = arith.constant 0 : index
    %95 = vector.load %arg2[%c0_35, %c0_36, %c0_37] : memref<1x1x128xf32, #tpu.memory_space<vmem>>, vector<1x1x128xf32>
    %96 = arith.mulf %94, %95 : vector<1x1x128xf32>
    %c0_38 = arith.constant 0 : index
    %c0_39 = arith.constant 0 : index
    %c0_40 = arith.constant 0 : index
    %97 = vector.load %arg11[%c0_38, %c0_39, %c0_40] : memref<1x1x128xf32, #tpu.memory_space<vmem>>, vector<1x1x128xf32>
    tpu.vector_store %arg11[%c0_38, %c0_39, %c0_40], %96 {strides = array<i32>} : memref<1x1x128xf32, #tpu.memory_space<vmem>>, vector<1x1x128xf32>,
    return
  }
  func.func @transform_0(%arg0: i32) -> (i32, i32, i32) {
    %c0_i32 = arith.constant 0 : i32
    %c0_i32_0 = arith.constant 0 : i32
    %c0_i32_1 = arith.constant 0 : i32
    return %arg0, %c0_i32, %c0_i32_0 : i32, i32, i32
  }
  func.func @transform_1(%arg0: i32) -> (i32, i32, i32) {
    %c0_i32 = arith.constant 0 : i32
    %c0_i32_0 = arith.constant 0 : i32
    %c0_i32_1 = arith.constant 0 : i32
    return %arg0, %c0_i32, %c0_i32_0 : i32, i32, i32
  }
  func.func @transform_2(%arg0: i32) -> (i32, i32) {
    %c0_i32 = arith.constant 0 : i32
    %c0_i32_0 = arith.constant 0 : i32
    %c0_i32_1 = arith.constant 0 : i32
    return %c0_i32, %c0_i32_0 : i32, i32
  }
  func.func @transform_3(%arg0: i32) -> (i32, i32) {
    %c0_i32 = arith.constant 0 : i32
    %c0_i32_0 = arith.constant 0 : i32
    %c0_i32_1 = arith.constant 0 : i32
    return %c0_i32, %c0_i32_0 : i32, i32
  }
  func.func @transform_4(%arg0: i32) -> (i32, i32) {
    %c0_i32 = arith.constant 0 : i32
    %c0_i32_0 = arith.constant 0 : i32
    %c0_i32_1 = arith.constant 0 : i32
    return %c0_i32, %c0_i32_0 : i32, i32
  }
  func.func @transform_5(%arg0: i32) -> (i32, i32) {
    %c0_i32 = arith.constant 0 : i32
    %c0_i32_0 = arith.constant 0 : i32
    %c0_i32_1 = arith.constant 0 : i32
    return %c0_i32, %c0_i32_0 : i32, i32
  }
  func.func @transform_6(%arg0: i32) -> (i32, i32) {
    %c0_i32 = arith.constant 0 : i32
    %c0_i32_0 = arith.constant 0 : i32
    %c0_i32_1 = arith.constant 0 : i32
    return %c0_i32, %c0_i32_0 : i32, i32
  }
  func.func @transform_7(%arg0: i32) -> (i32, i32) {
    %c0_i32 = arith.constant 0 : i32
    %c0_i32_0 = arith.constant 0 : i32
    %c0_i32_1 = arith.constant 0 : i32
    return %c0_i32, %c0_i32_0 : i32, i32
  }
  func.func @transform_8(%arg0: i32) -> (i32, i32) {
    %c0_i32 = arith.constant 0 : i32
    %c0_i32_0 = arith.constant 0 : i32
    %c0_i32_1 = arith.constant 0 : i32
    return %c0_i32, %c0_i32_0 : i32, i32
  }
  func.func @transform_9(%arg0: i32) -> (i32, i32) {
    %c0_i32 = arith.constant 0 : i32
    %c0_i32_0 = arith.constant 0 : i32
    %c0_i32_1 = arith.constant 0 : i32
    return %c0_i32, %c0_i32_0 : i32, i32
  }
  func.func @transform_10(%arg0: i32) -> (i32, i32, i32) {
    %c0_i32 = arith.constant 0 : i32
    %c0_i32_0 = arith.constant 0 : i32
    %c0_i32_1 = arith.constant 0 : i32
    return %arg0, %c0_i32, %c0_i32_0 : i32, i32, i32
  }
}

</mosaic_0001>

<llo_original>
// kernel: tpu_custom_call.1
$region0: #{tpu_custom_call.1}
  #allocation0 [shape = 'u32[]', space=smem, size = 0x4, offset = 0x4, fixed_abs, tag = 'smem constant byte address 0x4 - core index']
  #allocation1 [shape = 'u32[144,128]{1,0:T(1,128)}', space=vmem, size = 0x12000, scoped, tag = 'internal scratch']
  #allocation2 [shape = 'f32[1,1]{1,0:T(1,128)S(1)}', space=vmem, size = 0x200, scoped, tag = 'scoped memory for tpu_custom_call.1']
  %s0 = inlined_call_operand.vmem [shape: f32[2,16,32], index: 0, kind: input, shape index: {}]
  %s1 = inlined_call_operand.vmem [shape: f32[2,1,128], index: 1, kind: input, shape index: {}]
  %s2 = inlined_call_operand.vmem [shape: f32[96,32], index: 2, kind: input, shape index: {}]
  %s3 = inlined_call_operand.vmem [shape: f32[1,32], index: 3, kind: input, shape index: {}]
  %s4 = inlined_call_operand.vmem [shape: f32[1,32], index: 4, kind: input, shape index: {}]
  %s5 = inlined_call_operand.vmem [shape: f32[1,32], index: 5, kind: input, shape index: {}]
  %s6 = inlined_call_operand.vmem [shape: f32[96,32], index: 6, kind: input, shape index: {}]
  %s7 = inlined_call_operand.vmem [shape: f32[1,32], index: 7, kind: input, shape index: {}]
  %s8 = inlined_call_operand.vmem [shape: f32[1,32], index: 8, kind: input, shape index: {}]
  %s9 = inlined_call_operand.<no memory space> [shape: f32[1,1], index: 9, kind: input, shape index: {}]
  %s10 = inlined_call_operand.hbm [shape: f32[2,1,128], index: 10, kind: output, shape index: {}]
  %s11 = sld [smem:[#allocation0]]
  $region73: #{tpu_custom_call.1} parent=0
    _
  %s13 = ssub.s32 1, %s11
  %s14 = scalar_select 0, %s13, %s11
  %v15 = vstv %s9
  %16 = vst [vmem:[#allocation2] sm:$0x1] %v15
  $region1: #{tpu_custom_call.1} parent=0
    #allocation3 [shape = 'u8[1024]{0}', space=vmem, size = 0x400, scoped, tag = 'output window, operand 0']
    #allocation4 [shape = 's32[2]{0}', space=sflag, size = 0x8, scoped, tag = 'scoped memory for tpu_custom_call.1']
    %17 = vsyncpa [#allocation4], 0
    %s18 = scalar_lea.sflag [#allocation4], 1
    %19 = vsyncpa %s18, 0
    loop: start=0, step=1, limit=4
    $region2: #{tpu_custom_call.1} parent=1 // loop_pre_header
      _
    $region3: #{tpu_custom_call.1} parent=1 // loop_header
      %s21 = sphi 0, %s25
      %p22 = scmp.ge.s32.totalorder %s21, 4
      %s31 = sphi 0, %s33
      %s34 = sphi 0, %s31
      %s35 = sphi 0, %s34
      %s51 = sphi 0, %s35
      %s57 = sphi 0, %s59
      %s60 = sphi 0, %s57
      %s61 = sphi 0, %s60
      %s77 = sphi 0, %s61
      %s81 = sphi 0, %s81
      %s83 = sphi 0, %s81
      %s84 = sphi 0, %s83
      %s98 = sphi 0, %s84
      %s102 = sphi 0, %s102
      %s104 = sphi 0, %s102
      %s105 = sphi 0, %s104
      %s119 = sphi 0, %s105
      %s123 = sphi 0, %s123
      %s125 = sphi 0, %s123
      %s126 = sphi 0, %s125
      %s140 = sphi 0, %s126
      %s144 = sphi 0, %s144
      %s146 = sphi 0, %s144
      %s147 = sphi 0, %s146
      %s161 = sphi 0, %s147
      %s165 = sphi 0, %s165
      %s167 = sphi 0, %s165
      %s168 = sphi 0, %s167
      %s182 = sphi 0, %s168
      %s186 = sphi 0, %s186
      %s188 = sphi 0, %s186
      %s189 = sphi 0, %s188
      %s203 = sphi 0, %s189
      %s207 = sphi 0, %s207
      %s209 = sphi 0, %s207
      %s210 = sphi 0, %s209
      %s224 = sphi 0, %s210
      %s228 = sphi 0, %s228
      %s230 = sphi 0, %s228
      %s231 = sphi 0, %s230
      %s245 = sphi 0, %s231
      %s251 = sphi 0, %s253
      %s254 = sphi 0, %s251
      %s255 = sphi 0, %s254
      %s271 = sphi 0, %s255
    $region4: #{tpu_custom_call.1} parent=1 // loop_header_branch
      %24 = sbr.rel (%p22) target = $region8
    $region5: #{tpu_custom_call.1} parent=1 // loop_body
      %s26 = ssub.s32 %s21, 1
      %s27 = ssub.s32 %s21, 2
      %s28 = sadd.s32 %s21, 1
      %s29 = ssub.s32 %s21, %s28
      %p30 = scmp.eq.s32.totalorder %s29, 0
      %s32 = sadd.s32 %s31, 1
      %s33 = scalar_select %p30, %s31, %s32
      %p36 = pneg %p30
      %p37 = scmp.eq.s32.totalorder %s21, 1
      %p38 = por %p36, %p37
      %p39 = scmp.ne.s32.totalorder %s31, %s34
      %p40 = scmp.eq.s32.totalorder %s21, 0
      %p41 = por %p39, %p40
      %p42 = scmp.ne.s32.totalorder %s31, %s34
      %p43 = scmp.eq.s32.totalorder %s26, 1
      %p44 = por %p42, %p43
      %p45 = scmp.ne.s32.totalorder %s34, %s35
      %p46 = scmp.eq.s32.totalorder %s26, 0
      %p47 = por %p45, %p46
      %p48 = scmp.ne.s32.totalorder %s34, %s35
      %p49 = scmp.eq.s32.totalorder %s27, 1
      %p50 = por %p48, %p49
      %p52 = scmp.ne.s32.totalorder %s35, %s51
      %p53 = scmp.eq.s32.totalorder %s27, 0
      %p54 = por %p52, %p53
      %s55 = ssub.s32 %s21, %s28
      %p56 = scmp.eq.s32.totalorder %s55, 0
      %s58 = sadd.s32 %s57, 1
      %s59 = scalar_select %p56, %s57, %s58
      %p62 = pneg %p56
      %p63 = scmp.eq.s32.totalorder %s21, 1
      %p64 = por %p62, %p63
      %p65 = scmp.ne.s32.totalorder %s57, %s60
      %p66 = scmp.eq.s32.totalorder %s21, 0
      %p67 = por %p65, %p66
      %p68 = scmp.ne.s32.totalorder %s57, %s60
      %p69 = scmp.eq.s32.totalorder %s26, 1
      %p70 = por %p68, %p69
      %p71 = scmp.ne.s32.totalorder %s60, %s61
      %p72 = scmp.eq.s32.totalorder %s26, 0
      %p73 = por %p71, %p72
      %p74 = scmp.ne.s32.totalorder %s60, %s61
      %p75 = scmp.eq.s32.totalorder %s27, 1
      %p76 = por %p74, %p75
      %p78 = scmp.ne.s32.totalorder %s61, %s77
      %p79 = scmp.eq.s32.totalorder %s27, 0
      %p80 = por %p78, %p79
      %s82 = sadd.s32 %s81, 1
      %p85 = scmp.eq.s32.totalorder %s21, 1
      %p86 = scmp.ne.s32.totalorder %s81, %s83
      %p87 = scmp.eq.s32.totalorder %s21, 0
      %p88 = por %p86, %p87
      %p89 = scmp.ne.s32.totalorder %s81, %s83
      %p90 = scmp.eq.s32.totalorder %s26, 1
      %p91 = por %p89, %p90
      %p92 = scmp.ne.s32.totalorder %s83, %s84
      %p93 = scmp.eq.s32.totalorder %s26, 0
      %p94 = por %p92, %p93
      %p95 = scmp.ne.s32.totalorder %s83, %s84
      %p96 = scmp.eq.s32.totalorder %s27, 1
      %p97 = por %p95, %p96
      %p99 = scmp.ne.s32.totalorder %s84, %s98
      %p100 = scmp.eq.s32.totalorder %s27, 0
      %p101 = por %p99, %p100
      %s103 = sadd.s32 %s102, 1
      %p106 = scmp.eq.s32.totalorder %s21, 1
      %p107 = scmp.ne.s32.totalorder %s102, %s104
      %p108 = scmp.eq.s32.totalorder %s21, 0
      %p109 = por %p107, %p108
      %p110 = scmp.ne.s32.totalorder %s102, %s104
      %p111 = scmp.eq.s32.totalorder %s26, 1
      %p112 = por %p110, %p111
      %p113 = scmp.ne.s32.totalorder %s104, %s105
      %p114 = scmp.eq.s32.totalorder %s26, 0
      %p115 = por %p113, %p114
      %p116 = scmp.ne.s32.totalorder %s104, %s105
      %p117 = scmp.eq.s32.totalorder %s27, 1
      %p118 = por %p116, %p117
      %p120 = scmp.ne.s32.totalorder %s105, %s119
      %p121 = scmp.eq.s32.totalorder %s27, 0
      %p122 = por %p120, %p121
      %s124 = sadd.s32 %s123, 1
      %p127 = scmp.eq.s32.totalorder %s21, 1
      %p128 = scmp.ne.s32.totalorder %s123, %s125
      %p129 = scmp.eq.s32.totalorder %s21, 0
      %p130 = por %p128, %p129
      %p131 = scmp.ne.s32.totalorder %s123, %s125
      %p132 = scmp.eq.s32.totalorder %s26, 1
      %p133 = por %p131, %p132
      %p134 = scmp.ne.s32.totalorder %s125, %s126
      %p135 = scmp.eq.s32.totalorder %s26, 0
      %p136 = por %p134, %p135
      %p137 = scmp.ne.s32.totalorder %s125, %s126
      %p138 = scmp.eq.s32.totalorder %s27, 1
      %p139 = por %p137, %p138
      %p141 = scmp.ne.s32.totalorder %s126, %s140
      %p142 = scmp.eq.s32.totalorder %s27, 0
      %p143 = por %p141, %p142
      %s145 = sadd.s32 %s144, 1
      %p148 = scmp.eq.s32.totalorder %s21, 1
      %p149 = scmp.ne.s32.totalorder %s144, %s146
      %p150 = scmp.eq.s32.totalorder %s21, 0
      %p151 = por %p149, %p150
      %p152 = scmp.ne.s32.totalorder %s144, %s146
      %p153 = scmp.eq.s32.totalorder %s26, 1
      %p154 = por %p152, %p153
      %p155 = scmp.ne.s32.totalorder %s146, %s147
      %p156 = scmp.eq.s32.totalorder %s26, 0
      %p157 = por %p155, %p156
      %p158 = scmp.ne.s32.totalorder %s146, %s147
      %p159 = scmp.eq.s32.totalorder %s27, 1
      %p160 = por %p158, %p159
      %p162 = scmp.ne.s32.totalorder %s147, %s161
      %p163 = scmp.eq.s32.totalorder %s27, 0
      %p164 = por %p162, %p163
      %s166 = sadd.s32 %s165, 1
      %p169 = scmp.eq.s32.totalorder %s21, 1
      %p170 = scmp.ne.s32.totalorder %s165, %s167
      %p171 = scmp.eq.s32.totalorder %s21, 0
      %p172 = por %p170, %p171
      %p173 = scmp.ne.s32.totalorder %s165, %s167
      %p174 = scmp.eq.s32.totalorder %s26, 1
      %p175 = por %p173, %p174
      %p176 = scmp.ne.s32.totalorder %s167, %s168
      %p177 = scmp.eq.s32.totalorder %s26, 0
      %p178 = por %p176, %p177
      %p179 = scmp.ne.s32.totalorder %s167, %s168
      %p180 = scmp.eq.s32.totalorder %s27, 1
      %p181 = por %p179, %p180
      %p183 = scmp.ne.s32.totalorder %s168, %s182
      %p184 = scmp.eq.s32.totalorder %s27, 0
      %p185 = por %p183, %p184
      %s187 = sadd.s32 %s186, 1
      %p190 = scmp.eq.s32.totalorder %s21, 1
      %p191 = scmp.ne.s32.totalorder %s186, %s188
      %p192 = scmp.eq.s32.totalorder %s21, 0
      %p193 = por %p191, %p192
      %p194 = scmp.ne.s32.totalorder %s186, %s188
      %p195 = scmp.eq.s32.totalorder %s26, 1
      %p196 = por %p194, %p195
      %p197 = scmp.ne.s32.totalorder %s188, %s189
      %p198 = scmp.eq.s32.totalorder %s26, 0
      %p199 = por %p197, %p198
      %p200 = scmp.ne.s32.totalorder %s188, %s189
      %p201 = scmp.eq.s32.totalorder %s27, 1
      %p202 = por %p200, %p201
      %p204 = scmp.ne.s32.totalorder %s189, %s203
      %p205 = scmp.eq.s32.totalorder %s27, 0
      %p206 = por %p204, %p205
      %s208 = sadd.s32 %s207, 1
      %p211 = scmp.eq.s32.totalorder %s21, 1
      %p212 = scmp.ne.s32.totalorder %s207, %s209
      %p213 = scmp.eq.s32.totalorder %s21, 0
      %p214 = por %p212, %p213
      %p215 = scmp.ne.s32.totalorder %s207, %s209
      %p216 = scmp.eq.s32.totalorder %s26, 1
      %p217 = por %p215, %p216
      %p218 = scmp.ne.s32.totalorder %s209, %s210
      %p219 = scmp.eq.s32.totalorder %s26, 0
      %p220 = por %p218, %p219
      %p221 = scmp.ne.s32.totalorder %s209, %s210
      %p222 = scmp.eq.s32.totalorder %s27, 1
      %p223 = por %p221, %p222
      %p225 = scmp.ne.s32.totalorder %s210, %s224
      %p226 = scmp.eq.s32.totalorder %s27, 0
      %p227 = por %p225, %p226
      %s229 = sadd.s32 %s228, 1
      %p232 = scmp.eq.s32.totalorder %s21, 1
      %p233 = scmp.ne.s32.totalorder %s228, %s230
      %p234 = scmp.eq.s32.totalorder %s21, 0
      %p235 = por %p233, %p234
      %p236 = scmp.ne.s32.totalorder %s228, %s230
      %p237 = scmp.eq.s32.totalorder %s26, 1
      %p238 = por %p236, %p237
      %p239 = scmp.ne.s32.totalorder %s230, %s231
      %p240 = scmp.eq.s32.totalorder %s26, 0
      %p241 = por %p239, %p240
      %p242 = scmp.ne.s32.totalorder %s230, %s231
      %p243 = scmp.eq.s32.totalorder %s27, 1
      %p244 = por %p242, %p243
      %p246 = scmp.ne.s32.totalorder %s231, %s245
      %p247 = scmp.eq.s32.totalorder %s27, 0
      %p248 = por %p246, %p247
      %s249 = ssub.s32 %s21, %s28
      %p250 = scmp.eq.s32.totalorder %s249, 0
      %s252 = sadd.s32 %s251, 1
      %s253 = scalar_select %p250, %s251, %s252
      %p256 = pneg %p250
      %p257 = scmp.eq.s32.totalorder %s21, 1
      %p258 = por %p256, %p257
      %p259 = scmp.ne.s32.totalorder %s251, %s254
      %p260 = scmp.eq.s32.totalorder %s21, 0
      %p261 = por %p259, %p260
      %p262 = scmp.ne.s32.totalorder %s251, %s254
      %p263 = scmp.eq.s32.totalorder %s26, 1
      %p264 = por %p262, %p263
      %p265 = scmp.ne.s32.totalorder %s254, %s255
      %p266 = scmp.eq.s32.totalorder %s26, 0
      %p267 = por %p265, %p266
      %p268 = scmp.ne.s32.totalorder %s254, %s255
      %p269 = scmp.eq.s32.totalorder %s27, 1
      %p270 = por %p268, %p269
      %p272 = scmp.ne.s32.totalorder %s255, %s271
      %p273 = scmp.eq.s32.totalorder %s27, 0
      %p274 = por %p272, %p273
      %p275 = scmp.le.s32.totalorder 1, %s21
      %p276 = scmp.lt.s32.totalorder %s21, 3
      %p277 = pnand %p275, %p276
      %p278 = pneg %p277
      // Predicated region
      $region9: #{tpu_custom_call.1} parent=5 // pred_check
        _
      $region10: #{tpu_custom_call.1} parent=5 // pred_check_branch
        %280 = sbr.rel (%p277) target = $region12
      $region11: #{tpu_custom_call.1} parent=5 // pred_region
        %s281 = ssub.s32 %s21, 1
        // Predicated region
        $region13: #{tpu_custom_call.1} parent=11 // pred_check
          %p282 = pneg %p94
        $region14: #{tpu_custom_call.1} parent=11 // pred_check_branch
          %284 = sbr.rel (%p282) target = $region16
        $region15: #{tpu_custom_call.1} parent=11 // pred_region
          _
        $region16: #{tpu_custom_call.1} parent=11 // pred_fallthru
          _
        // Predicated region
        $region17: #{tpu_custom_call.1} parent=11 // pred_check
          %p285 = pneg %p115
        $region18: #{tpu_custom_call.1} parent=11 // pred_check_branch
          %287 = sbr.rel (%p285) target = $region20
        $region19: #{tpu_custom_call.1} parent=11 // pred_region
          _
        $region20: #{tpu_custom_call.1} parent=11 // pred_fallthru
          _
        // Predicated region
        $region21: #{tpu_custom_call.1} parent=11 // pred_check
          %p288 = pneg %p136
        $region22: #{tpu_custom_call.1} parent=11 // pred_check_branch
          %290 = sbr.rel (%p288) target = $region24
        $region23: #{tpu_custom_call.1} parent=11 // pred_region
          _
        $region24: #{tpu_custom_call.1} parent=11 // pred_fallthru
          _
        // Predicated region
        $region25: #{tpu_custom_call.1} parent=11 // pred_check
          %p291 = pneg %p157
        $region26: #{tpu_custom_call.1} parent=11 // pred_check_branch
          %293 = sbr.rel (%p291) target = $region28
        $region27: #{tpu_custom_call.1} parent=11 // pred_region
          _
        $region28: #{tpu_custom_call.1} parent=11 // pred_fallthru
          _
        // Predicated region
        $region29: #{tpu_custom_call.1} parent=11 // pred_check
          %p294 = pneg %p178
        $region30: #{tpu_custom_call.1} parent=11 // pred_check_branch
          %296 = sbr.rel (%p294) target = $region32
        $region31: #{tpu_custom_call.1} parent=11 // pred_region
          _
        $region32: #{tpu_custom_call.1} parent=11 // pred_fallthru
          _
        // Predicated region
        $region33: #{tpu_custom_call.1} parent=11 // pred_check
          %p297 = pneg %p199
        $region34: #{tpu_custom_call.1} parent=11 // pred_check_branch
          %299 = sbr.rel (%p297) target = $region36
        $region35: #{tpu_custom_call.1} parent=11 // pred_region
          _
        $region36: #{tpu_custom_call.1} parent=11 // pred_fallthru
          _
        // Predicated region
        $region37: #{tpu_custom_call.1} parent=11 // pred_check
          %p300 = pneg %p220
        $region38: #{tpu_custom_call.1} parent=11 // pred_check_branch
          %302 = sbr.rel (%p300) target = $region40
        $region39: #{tpu_custom_call.1} parent=11 // pred_region
          _
        $region40: #{tpu_custom_call.1} parent=11 // pred_fallthru
          _
        // Predicated region
        $region41: #{tpu_custom_call.1} parent=11 // pred_check
          %p303 = pneg %p241
        $region42: #{tpu_custom_call.1} parent=11 // pred_check_branch
          %305 = sbr.rel (%p303) target = $region44
        $region43: #{tpu_custom_call.1} parent=11 // pred_region
          _
        $region44: #{tpu_custom_call.1} parent=11 // pred_fallthru
          _
      $region12: #{tpu_custom_call.1} parent=5 // pred_fallthru
        _
      %p306 = scmp.lt.s32.totalorder %s21, 2
      // Predicated region
      $region45: #{tpu_custom_call.1} parent=5 // pred_check
        %p307 = pneg %p306
      $region46: #{tpu_custom_call.1} parent=5 // pred_check_branch
        %309 = sbr.rel (%p307) target = $region48
      $region47: #{tpu_custom_call.1} parent=5 // pred_region
        // Predicated region
        $region49: #{tpu_custom_call.1} parent=47 // pred_check
          %p310 = pneg %p41
        $region50: #{tpu_custom_call.1} parent=47 // pred_check_branch
          %312 = sbr.rel (%p310) target = $region52
        $region51: #{tpu_custom_call.1} parent=47 // pred_region
          %p313 = scmp.lt.s32.totalorder %s21, 1
          %s314 = scalar_select %p313, %s21, 1
          %s315 = smul.addr %s314, 2
          %s316 = smul.addr %s315, 8
          %s317 = scalar_lea.vmem %s0, %s316
        $region52: #{tpu_custom_call.1} parent=47 // pred_fallthru
          _
        // Predicated region
        $region53: #{tpu_custom_call.1} parent=47 // pred_check
          %p318 = pneg %p67
        $region54: #{tpu_custom_call.1} parent=47 // pred_check_branch
          %320 = sbr.rel (%p318) target = $region56
        $region55: #{tpu_custom_call.1} parent=47 // pred_region
          %p321 = scmp.lt.s32.totalorder %s21, 1
          %s322 = scalar_select %p321, %s21, 1
          %s323 = scalar_lea.vmem %s1, %s322
        $region56: #{tpu_custom_call.1} parent=47 // pred_fallthru
          _
      $region48: #{tpu_custom_call.1} parent=5 // pred_fallthru
        _
      %p324 = scmp.le.s32.totalorder 1, %s21
      %p325 = scmp.lt.s32.totalorder %s21, 3
      %p326 = pnand %p324, %p325
      %p327 = pneg %p326
      // Predicated region
      $region57: #{tpu_custom_call.1} parent=5 // pred_check
        _
      $region58: #{tpu_custom_call.1} parent=5 // pred_check_branch
        %329 = sbr.rel (%p326) target = $region60
      $region59: #{tpu_custom_call.1} parent=5 // pred_region
        %s330 = ssub.s32 %s21, 1
        %p331 = scmp.lt.s32.totalorder %s26, 1
        %s332 = scalar_select %p331, %s26, 1
        %s333 = smul.addr %s332, 2
        %s334 = smul.addr %s333, 8
        %s335 = scalar_lea.vmem %s0, %s334
        %p336 = pneg %p47
        %p337 = pneg %p44
        %p338 = scmp.lt.s32.totalorder %s26, 1
        %s339 = scalar_select %p338, %s26, 1
        %s340 = scalar_lea.vmem %s1, %s339
        %p341 = pneg %p73
        %p342 = pneg %p70
        %p343 = pneg %p94
        %p344 = pneg %p91
        %p345 = pneg %p115
        %p346 = pneg %p112
        %p347 = pneg %p136
        %p348 = pneg %p133
        %p349 = pneg %p157
        %p350 = pneg %p154
        %p351 = pneg %p178
        %p352 = pneg %p175
        %p353 = pneg %p199
        %p354 = pneg %p196
        %p355 = pneg %p220
        %p356 = pneg %p217
        %p357 = pneg %p241
        %p358 = pneg %p238
        %p359 = pneg %p267
        %p360 = pneg %p264
        %s361 = sand.u32 %s254, 1
        %s362 = scalar_lea.sflag [#allocation4], %s361
        %s363 = sand.u32 %s254, 1
        %s364 = scalar_lea.vmem [#allocation3], %s363
        %p365 = scmp.lt.s32.totalorder %s26, 1
        %s366 = scalar_select %p365, %s26, 1
        %s367 = smul.addr %s366, 2
        %s368 = smul.addr %s367, 8
        %s369 = scalar_lea.vmem %s0, %s368
        %p370 = scmp.lt.s32.totalorder %s26, 1
        %s371 = scalar_select %p370, %s26, 1
        %s372 = scalar_lea.vmem %s1, %s371
        %v373 = vld [vmem:[%s3] sm:$0x1]
        %v374 = vld [vmem:[%s4] sm:$0x1]
        %v375 = vld [vmem:[%s5] sm:$0x1]
        %v376 = vld [vmem:[%s7] sm:$0x1]
        %v377 = vld [vmem:[%s8] sm:$0x1]
        %vm378 = vcmask 253952
        %v379 = vsel %vm378, %v377, 0.0
        %380 = vadd.xlane.f32.xlu0 %v379
        %v381 = vpop.xlane.xlu0 %380
        %v382 = vrot.slane %v381, 4
        %v383 = vadd.f32 %v381, %v382
        %v384 = vrot.slane %v383, 2
        %v385 = vadd.f32 %v383, %v384
        %v386 = vrot.slane %v385, 1
        %v387 = vadd.f32 %v385, %v386
        %s388 = vtos %v387
        %v389 = vld [vmem:[#allocation2] sm:$0x1]
        %v390 = vld [vmem:[%s369] sm:$0xff]
        %v391 = vld [vmem:[%s369 + $0x8] sm:$0xff]
        %vm394 = vcmask 1041408
        %v395 = vrot.slane %v390, 6
        %v396 = vrot.slane %v391, 6
        %v397 = vsel %vm394, %v395, %v396
        %v401 = vsel %vm394, 0.0, %v395
        %v402 = vsel %vm394, %v396, 0.0
        %vm406 = vcmask 1046528
        %v407 = vrot.slane %v401, 1
        %v408 = vrot.slane %v397, 1
        %v409 = vsel %vm406, %v407, %v408
        %v410 = vrot.slane %v402, 1
        %v411 = vsel %vm406, %v408, %v410
        %v412 = vrot.slane 0.0, 1
        %v413 = vsel %vm406, %v410, %v412
        %v414 = vsel %vm406, %v412, %v412
        %415 = vrot.lane.b32.xlu0 %v409, 32
        %v416 = vpop.permute.xlu0 %415
        %417 = vrot.lane.b32.xlu0 %v411, 32
        %v418 = vpop.permute.xlu0 %417
        %419 = vrot.lane.b32.xlu0 %v413, 32
        %v420 = vpop.permute.xlu0 %419
        %421 = vrot.lane.b32.xlu0 %v414, 32
        %v422 = vpop.permute.xlu0 %421
        %vm427 = vcmask 1045504
        %v428 = vrot.slane %v401, 2
        %v429 = vrot.slane %v397, 2
        %v430 = vsel %vm427, %v428, %v429
        %v431 = vrot.slane %v402, 2
        %v432 = vsel %vm427, %v429, %v431
        %v433 = vrot.slane 0.0, 2
        %v434 = vsel %vm427, %v431, %v433
        %v435 = vsel %vm427, %v433, %v433
        %436 = vrot.lane.b32.xlu0 %v430, 64
        %v437 = vpop.permute.xlu0 %436
        %438 = vrot.lane.b32.xlu0 %v432, 64
        %v439 = vpop.permute.xlu0 %438
        %440 = vrot.lane.b32.xlu0 %v434, 64
        %v441 = vpop.permute.xlu0 %440
        %442 = vrot.lane.b32.xlu0 %v435, 64
        %v443 = vpop.permute.xlu0 %442
        %vm448 = vcmask 261120
        %v449 = vsel %vm448, %v401, %v416
        %v450 = vsel %vm448, %v397, %v418
        %v451 = vsel %vm448, %v402, %v420
        %v452 = vsel %vm448, 0.0, %v422
        %vm453 = vcmask 523264
        %v454 = vsel %vm453, %v449, %v437
        %v455 = vsel %vm453, %v450, %v439
        %v456 = vsel %vm453, %v451, %v441
        %v457 = vsel %vm453, %v452, %v443
        %v458 = vld [vmem:[%s2] sm:$0xff]
        %v459 = vld [vmem:[%s2 + $0x8] sm:$0xff]
        %v460 = vld [vmem:[%s2 + $0x10] sm:$0xff]
        %v461 = vld [vmem:[%s2 + $0x18] sm:$0xff]
        %v462 = vld [vmem:[%s2 + $0x20] sm:$0xff]
        %v463 = vld [vmem:[%s2 + $0x28] sm:$0xff]
        %v464 = vld [vmem:[%s2 + $0x30] sm:$0xff]
        %v465 = vld [vmem:[%s2 + $0x38] sm:$0xff]
        %v466 = vld [vmem:[%s2 + $0x40] sm:$0xff]
        %v467 = vld [vmem:[%s2 + $0x48] sm:$0xff]
        %v468 = vld [vmem:[%s2 + $0x50] sm:$0xff]
        %v469 = vld [vmem:[%s2 + $0x58] sm:$0xff]
        %v471 = vlaneseq
        %v472 = vshrl.u32 %v471, 7
        %v473 = vsub.s32 0, %v472
        %v474 = vrot.slane %v373, %v473
        %vm476 = vcmask 785408
        %v478 = vsel %vm476, %v454, 0
        %v481 = vsel %vm476, %v455, 0
        %v484 = vsel %vm476, %v456, 0
        %v487 = vsel %vm476, %v457, 0
        %489 = vmatprep.subr.mxu0 0.0
        %490 = vmatpush1.msra.mxu0 %v458
        %491 = vmatprep.subr.mxu0 0.0
        %492 = vmatpush1.msra.mxu0 %v459
        %493 = vmatprep.subr.mxu0 0.0
        %494 = vmatpush1.msra.mxu0 %v460
        %495 = vmatprep.subr.mxu0 0.0
        %496 = vmatpush1.msra.mxu0 %v461
        %497 = vmatprep.subr.mxu0 0.0
        %498 = vmatpush1.msra.mxu0 %v462
        %499 = vmatprep.subr.mxu0 0.0
        %500 = vmatpush1.msra.mxu0 %v463
        %501 = vmatprep.subr.mxu0 0.0
        %502 = vmatpush1.msra.mxu0 %v464
        %503 = vmatprep.subr.mxu0 0.0
        %504 = vmatpush1.msra.mxu0 %v465
        %505 = vmatprep.subr.mxu0 0.0
        %506 = vmatpush1.msra.mxu0 %v466
        %507 = vmatprep.subr.mxu0 0.0
        %508 = vmatpush1.msra.mxu0 %v467
        %509 = vmatprep.subr.mxu0 0.0
        %510 = vmatpush1.msra.mxu0 %v468
        %511 = vmatprep.subr.mxu0 0.0
        %512 = vmatpush1.msra.mxu0 %v469
        %513 = vmatprep.subr.mxu0 0.0
        %514 = vmatpush1.msra.mxu0 0.0
        %515 = vmatprep.subr.mxu0 0.0
        %516 = vmatpush1.msra.mxu0 0.0
        %517 = vmatprep.subr.mxu0 0.0
        %518 = vmatpush1.msra.mxu0 0.0
        %519 = vmatprep.subr.mxu0 0.0
        %520 = vmatpush1.msra.mxu0 0.0
        %521 = vmatprep.subr.mxu0 0.0
        %522 = vmatpush1.msra.mxu0 0.0
        %523 = vmatprep.subr.mxu0 0.0
        %524 = vmatpush1.msra.mxu0 0.0
        %525 = vmatprep.subr.mxu0 0.0
        %526 = vmatpush1.msra.mxu0 0.0
        %527 = vmatprep.subr.mxu0 0.0
        %528 = vmatpush1.msra.mxu0 0.0
        %529 = vmatprep.subr.mxu0 0.0
        %530 = vmatpush1.msra.mxu0 0.0
        %531 = vmatprep.subr.mxu0 0.0
        %532 = vmatpush1.msra.mxu0 0.0
        %533 = vmatprep.subr.mxu0 0.0
        %534 = vmatpush1.msra.mxu0 0.0
        %535 = vmatprep.subr.mxu0 0.0
        %536 = vmatpush1.msra.mxu0 0.0
        %537 = vmatprep.subr.mxu0 0.0
        %538 = vmatpush1.msra.mxu0 0.0
        %539 = vmatprep.subr.mxu0 0.0
        %540 = vmatpush1.msra.mxu0 0.0
        %541 = vmatprep.subr.mxu0 0.0
        %542 = vmatpush1.msra.mxu0 0.0
        %543 = vmatprep.subr.mxu0 0.0
        %544 = vmatpush1.msra.mxu0 0.0
        %545 = vmatprep.subr.mxu0 0.0
        %546 = vmatpush1.msra.mxu0 0.0
        %547 = vmatprep.subr.mxu0 0.0
        %548 = vmatpush1.msra.mxu0 0.0
        %549 = vmatprep.subr.mxu0 0.0
        %550 = vmatpush1.msra.mxu0 0.0
        %551 = vmatprep.subr.mxu0 0.0
        %552 = vmatpush1.msra.mxu0 0.0
        %553 = vmatprep.mubr.f32.mxu0 0.0
        %554 = vmatmul.mubr.f32.gmra.mrb[0].mxu0 %v478
        %v555 = vpop.f32.mrb[0].mxu0
        %v556 = vadd.f32 %v474, %v555
        %v557 = vpop.f32.mrb[0].mxu0
        %558 = vmatprep.mubr.f32.mxu0 0.0
        %559 = vmatmul.mubr.f32.gmra.mrb[0].mxu0 %v481
        %v560 = vpop.f32.mrb[0].mxu0
        %v561 = vadd.f32 %v474, %v560
        %v562 = vpop.f32.mrb[0].mxu0
        %563 = vmatprep.mubr.f32.mxu0 0.0
        %564 = vmatmul.mubr.f32.gmra.mrb[0].mxu0 %v484
        %v565 = vpop.f32.mrb[0].mxu0
        %v566 = vadd.f32 %v474, %v565
        %v567 = vpop.f32.mrb[0].mxu0
        %568 = vmatprep.mubr.f32.mxu0 0.0
        %569 = vmatmul.mubr.f32.gmra.mrb[0].mxu0 %v487
        %v570 = vpop.f32.mrb[0].mxu0
        %v571 = vadd.f32 %v474, %v570
        %v572 = vpop.f32.mrb[0].mxu0
        %573 = vmatprep.mubr.f32.mxu0 0.0
        %574 = vmatmul.mubr.f32.gmra.mrb[0].mxu0 %v487
        %v575 = vpop.f32.mrb[0].mxu0
        %v576 = vadd.f32 %v474, %v575
        %v577 = vpop.f32.mrb[0].mxu0
        %578 = vmatprep.mubr.f32.mxu0 0.0
        %579 = vmatmul.mubr.f32.gmra.mrb[0].mxu0 %v487
        %v580 = vpop.f32.mrb[0].mxu0
        %v581 = vadd.f32 %v474, %v580
        %v582 = vpop.f32.mrb[0].mxu0
        %583 = vmatprep.mubr.f32.mxu0 0.0
        %584 = vmatmul.mubr.f32.gmra.mrb[0].mxu0 %v487
        %v585 = vpop.f32.mrb[0].mxu0
        %v586 = vadd.f32 %v474, %v585
        %v587 = vpop.f32.mrb[0].mxu0
        %588 = vmatprep.mubr.f32.mxu0 0.0
        %589 = vmatmul.mubr.f32.gmra.mrb[0].mxu0 %v487
        %v590 = vpop.f32.mrb[0].mxu0
        %v591 = vadd.f32 %v474, %v590
        %v592 = vpop.f32.mrb[0].mxu0
        %593 = vmatprep.mubr.f32.mxu0 0.0
        %594 = vmatmul.mubr.f32.gmra.mrb[0].mxu0 %v487
        %v595 = vpop.f32.mrb[0].mxu0
        %v596 = vadd.f32 %v474, %v595
        %v597 = vpop.f32.mrb[0].mxu0
        %598 = vmatprep.mubr.f32.mxu0 0.0
        %599 = vmatmul.mubr.f32.gmra.mrb[0].mxu0 %v487
        %v600 = vpop.f32.mrb[0].mxu0
        %v601 = vadd.f32 %v474, %v600
        %v602 = vpop.f32.mrb[0].mxu0
        %603 = vmatprep.mubr.f32.mxu0 0.0
        %604 = vmatmul.mubr.f32.gmra.mrb[0].mxu0 %v487
        %v605 = vpop.f32.mrb[0].mxu0
        %v606 = vadd.f32 %v474, %v605
        %v607 = vpop.f32.mrb[0].mxu0
        %608 = vmatprep.mubr.f32.mxu0 0.0
        %609 = vmatmul.mubr.f32.gmra.mrb[0].mxu0 %v487
        %v610 = vpop.f32.mrb[0].mxu0
        %v611 = vadd.f32 %v474, %v610
        %v612 = vpop.f32.mrb[0].mxu0
        %613 = vmatprep.mubr.f32.mxu0 0.0
        %614 = vmatmul.mubr.f32.gmra.mrb[0].mxu0 %v487
        %v615 = vpop.f32.mrb[0].mxu0
        %v616 = vadd.f32 %v474, %v615
        %v617 = vpop.f32.mrb[0].mxu0
        %618 = vmatprep.mubr.f32.mxu0 0.0
        %619 = vmatmul.mubr.f32.gmra.mrb[0].mxu0 %v487
        %v620 = vpop.f32.mrb[0].mxu0
        %v621 = vadd.f32 %v474, %v620
        %v622 = vpop.f32.mrb[0].mxu0
        %623 = vmatprep.mubr.f32.mxu0 0.0
        %624 = vmatmul.mubr.f32.gmra.mrb[0].mxu0 %v487
        %v625 = vpop.f32.mrb[0].mxu0
        %v626 = vadd.f32 %v474, %v625
        %v627 = vpop.f32.mrb[0].mxu0
        %628 = vmatprep.mubr.f32.mxu0 0.0
        %629 = vmatmul.mubr.f32.gmra.mrb[0].mxu0 %v487
        %v630 = vpop.f32.mrb[0].mxu0
        %v631 = vadd.f32 %v474, %v630
        %v632 = vpop.f32.mrb[0].mxu0
        %633 = vmatprep.mubr.f32.mxu0 0.0
        %634 = vmatmul.mubr.f32.gmra.mrb[0].mxu0 %v487
        %v635 = vpop.f32.mrb[0].mxu0
        %v636 = vadd.f32 %v474, %v635
        %v637 = vpop.f32.mrb[0].mxu0
        %638 = vdwg.mxu0
        %v639 = vmax.f32 %v556, 0.0
        %v640 = vmax.f32 %v561, 0.0
        %v641 = vmax.f32 %v566, 0.0
        %v642 = vmax.f32 %v571, 0.0
        %v643 = vmax.f32 %v576, 0.0
        %v644 = vmax.f32 %v581, 0.0
        %v645 = vmax.f32 %v586, 0.0
        %v646 = vmax.f32 %v591, 0.0
        %v647 = vmax.f32 %v596, 0.0
        %v648 = vmax.f32 %v601, 0.0
        %v649 = vmax.f32 %v606, 0.0
        %v650 = vmax.f32 %v611, 0.0
        %v651 = vmax.f32 %v616, 0.0
        %v652 = vmax.f32 %v621, 0.0
        %v653 = vmax.f32 %v626, 0.0
        %v654 = vmax.f32 %v631, 0.0
        %v655 = vmax.f32 %v636, 0.0
        %v656 = vsel %vm448, %v639, 0.0
        %657 = vadd.xlane.f32.xlu0 %v656
        %v658 = vpop.xlane.xlu0 %657
        %v659 = vsel %vm448, %v640, 0.0
        %660 = vadd.xlane.f32.xlu0 %v659
        %v661 = vpop.xlane.xlu0 %660
        %v662 = vsel %vm448, %v641, 0.0
        %663 = vadd.xlane.f32.xlu0 %v662
        %v664 = vpop.xlane.xlu0 %663
        %v665 = vsel %vm448, %v642, 0.0
        %666 = vadd.xlane.f32.xlu0 %v665
        %v667 = vpop.xlane.xlu0 %666
        %v668 = vsel %vm448, %v643, 0.0
        %669 = vadd.xlane.f32.xlu0 %v668
        %v670 = vpop.xlane.xlu0 %669
        %v671 = vsel %vm448, %v644, 0.0
        %672 = vadd.xlane.f32.xlu0 %v671
        %v673 = vpop.xlane.xlu0 %672
        %v674 = vsel %vm448, %v645, 0.0
        %675 = vadd.xlane.f32.xlu0 %v674
        %v676 = vpop.xlane.xlu0 %675
        %v677 = vsel %vm448, %v646, 0.0
        %678 = vadd.xlane.f32.xlu0 %v677
        %v679 = vpop.xlane.xlu0 %678
        %v680 = vsel %vm448, %v647, 0.0
        %681 = vadd.xlane.f32.xlu0 %v680
        %v682 = vpop.xlane.xlu0 %681
        %v683 = vsel %vm448, %v648, 0.0
        %684 = vadd.xlane.f32.xlu0 %v683
        %v685 = vpop.xlane.xlu0 %684
        %v686 = vsel %vm448, %v649, 0.0
        %687 = vadd.xlane.f32.xlu0 %v686
        %v688 = vpop.xlane.xlu0 %687
        %v689 = vsel %vm448, %v650, 0.0
        %690 = vadd.xlane.f32.xlu0 %v689
        %v691 = vpop.xlane.xlu0 %690
        %v692 = vsel %vm448, %v651, 0.0
        %693 = vadd.xlane.f32.xlu0 %v692
        %v694 = vpop.xlane.xlu0 %693
        %v695 = vsel %vm448, %v652, 0.0
        %696 = vadd.xlane.f32.xlu0 %v695
        %v697 = vpop.xlane.xlu0 %696
        %v698 = vsel %vm448, %v653, 0.0
        %699 = vadd.xlane.f32.xlu0 %v698
        %v700 = vpop.xlane.xlu0 %699
        %v701 = vsel %vm448, %v654, 0.0
        %702 = vadd.xlane.f32.xlu0 %v701
        %v703 = vpop.xlane.xlu0 %702
        %v704 = vsel %vm448, %v655, 0.0
        %705 = vadd.xlane.f32.xlu0 %v704
        %v706 = vpop.xlane.xlu0 %705
        %v707 = vrcp.pop 32.0
        %v708 = vmul.f32 %v658, %v707
        %v709 = vmul.f32 %v661, %v707
        %v710 = vmul.f32 %v664, %v707
        %v711 = vmul.f32 %v667, %v707
        %v712 = vmul.f32 %v670, %v707
        %v713 = vmul.f32 %v673, %v707
        %v714 = vmul.f32 %v676, %v707
        %v715 = vmul.f32 %v679, %v707
        %v716 = vmul.f32 %v682, %v707
        %v717 = vmul.f32 %v685, %v707
        %v718 = vmul.f32 %v688, %v707
        %v719 = vmul.f32 %v691, %v707
        %v720 = vmul.f32 %v694, %v707
        %v721 = vmul.f32 %v697, %v707
        %v722 = vmul.f32 %v700, %v707
        %v723 = vmul.f32 %v703, %v707
        %v724 = vmul.f32 %v706, %v707
        %v725 = vmul.f32 %v639, %v639
        %v726 = vmul.f32 %v640, %v640
        %v727 = vmul.f32 %v641, %v641
        %v728 = vmul.f32 %v642, %v642
        %v729 = vmul.f32 %v643, %v643
        %v730 = vmul.f32 %v644, %v644
        %v731 = vmul.f32 %v645, %v645
        %v732 = vmul.f32 %v646, %v646
        %v733 = vmul.f32 %v647, %v647
        %v734 = vmul.f32 %v648, %v648
        %v735 = vmul.f32 %v649, %v649
        %v736 = vmul.f32 %v650, %v650
        %v737 = vmul.f32 %v651, %v651
        %v738 = vmul.f32 %v652, %v652
        %v739 = vmul.f32 %v653, %v653
        %v740 = vmul.f32 %v654, %v654
        %v741 = vmul.f32 %v655, %v655
        %v742 = vsel %vm448, %v725, 0.0
        %743 = vadd.xlane.f32.xlu0 %v742
        %v744 = vpop.xlane.xlu0 %743
        %v745 = vsel %vm448, %v726, 0.0
        %746 = vadd.xlane.f32.xlu0 %v745
        %v747 = vpop.xlane.xlu0 %746
        %v748 = vsel %vm448, %v727, 0.0
        %749 = vadd.xlane.f32.xlu0 %v748
        %v750 = vpop.xlane.xlu0 %749
        %v751 = vsel %vm448, %v728, 0.0
        %752 = vadd.xlane.f32.xlu0 %v751
        %v753 = vpop.xlane.xlu0 %752
        %v754 = vsel %vm448, %v729, 0.0
        %755 = vadd.xlane.f32.xlu0 %v754
        %v756 = vpop.xlane.xlu0 %755
        %v757 = vsel %vm448, %v730, 0.0
        %758 = vadd.xlane.f32.xlu0 %v757
        %v759 = vpop.xlane.xlu0 %758
        %v760 = vsel %vm448, %v731, 0.0
        %761 = vadd.xlane.f32.xlu0 %v760
        %v762 = vpop.xlane.xlu0 %761
        %v763 = vsel %vm448, %v732, 0.0
        %764 = vadd.xlane.f32.xlu0 %v763
        %v765 = vpop.xlane.xlu0 %764
        %v766 = vsel %vm448, %v733, 0.0
        %767 = vadd.xlane.f32.xlu0 %v766
        %v768 = vpop.xlane.xlu0 %767
        %v769 = vsel %vm448, %v734, 0.0
        %770 = vadd.xlane.f32.xlu0 %v769
        %v771 = vpop.xlane.xlu0 %770
        %v772 = vsel %vm448, %v735, 0.0
        %773 = vadd.xlane.f32.xlu0 %v772
        %v774 = vpop.xlane.xlu0 %773
        %v775 = vsel %vm448, %v736, 0.0
        %776 = vadd.xlane.f32.xlu0 %v775
        %v777 = vpop.xlane.xlu0 %776
        %v778 = vsel %vm448, %v737, 0.0
        %779 = vadd.xlane.f32.xlu0 %v778
        %v780 = vpop.xlane.xlu0 %779
        %v781 = vsel %vm448, %v738, 0.0
        %782 = vadd.xlane.f32.xlu0 %v781
        %v783 = vpop.xlane.xlu0 %782
        %v784 = vsel %vm448, %v739, 0.0
        %785 = vadd.xlane.f32.xlu0 %v784
        %v786 = vpop.xlane.xlu0 %785
        %v787 = vsel %vm448, %v740, 0.0
        %788 = vadd.xlane.f32.xlu0 %v787
        %v789 = vpop.xlane.xlu0 %788
        %v790 = vsel %vm448, %v741, 0.0
        %791 = vadd.xlane.f32.xlu0 %v790
        %v792 = vpop.xlane.xlu0 %791
        %v793 = vmul.f32 %v744, %v707
        %v794 = vmul.f32 %v747, %v707
        %v795 = vmul.f32 %v750, %v707
        %v796 = vmul.f32 %v753, %v707
        %v797 = vmul.f32 %v756, %v707
        %v798 = vmul.f32 %v759, %v707
        %v799 = vmul.f32 %v762, %v707
        %v800 = vmul.f32 %v765, %v707
        %v801 = vmul.f32 %v768, %v707
        %v802 = vmul.f32 %v771, %v707
        %v803 = vmul.f32 %v774, %v707
        %v804 = vmul.f32 %v777, %v707
        %v805 = vmul.f32 %v780, %v707
        %v806 = vmul.f32 %v783, %v707
        %v807 = vmul.f32 %v786, %v707
        %v808 = vmul.f32 %v789, %v707
        %v809 = vmul.f32 %v792, %v707
        %v810 = vmul.f32 %v708, %v708
        %v811 = vmul.f32 %v709, %v709
        %v812 = vmul.f32 %v710, %v710
        %v813 = vmul.f32 %v711, %v711
        %v814 = vmul.f32 %v712, %v712
        %v815 = vmul.f32 %v713, %v713
        %v816 = vmul.f32 %v714, %v714
        %v817 = vmul.f32 %v715, %v715
        %v818 = vmul.f32 %v716, %v716
        %v819 = vmul.f32 %v717, %v717
        %v820 = vmul.f32 %v718, %v718
        %v821 = vmul.f32 %v719, %v719
        %v822 = vmul.f32 %v720, %v720
        %v823 = vmul.f32 %v721, %v721
        %v824 = vmul.f32 %v722, %v722
        %v825 = vmul.f32 %v723, %v723
        %v826 = vmul.f32 %v724, %v724
        %v827 = vsub.f32 %v793, %v810
        %v828 = vsub.f32 %v794, %v811
        %v829 = vsub.f32 %v795, %v812
        %v830 = vsub.f32 %v796, %v813
        %v831 = vsub.f32 %v797, %v814
        %v832 = vsub.f32 %v798, %v815
        %v833 = vsub.f32 %v799, %v816
        %v834 = vsub.f32 %v800, %v817
        %v835 = vsub.f32 %v801, %v818
        %v836 = vsub.f32 %v802, %v819
        %v837 = vsub.f32 %v803, %v820
        %v838 = vsub.f32 %v804, %v821
        %v839 = vsub.f32 %v805, %v822
        %v840 = vsub.f32 %v806, %v823
        %v841 = vsub.f32 %v807, %v824
        %v842 = vsub.f32 %v808, %v825
        %v843 = vsub.f32 %v809, %v826
        %v844 = vsub.f32 %v639, %v708
        %v845 = vsub.f32 %v640, %v709
        %v846 = vsub.f32 %v641, %v710
        %v847 = vsub.f32 %v642, %v711
        %v848 = vsub.f32 %v643, %v712
        %v849 = vsub.f32 %v644, %v713
        %v850 = vsub.f32 %v645, %v714
        %v851 = vsub.f32 %v646, %v715
        %v852 = vsub.f32 %v647, %v716
        %v853 = vsub.f32 %v648, %v717
        %v854 = vsub.f32 %v649, %v718
        %v855 = vsub.f32 %v650, %v719
        %v856 = vsub.f32 %v651, %v720
        %v857 = vsub.f32 %v652, %v721
        %v858 = vsub.f32 %v653, %v722
        %v859 = vsub.f32 %v654, %v723
        %v860 = vsub.f32 %v655, %v724
        %v861 = vadd.f32 %v827, 1e-05
        %v862 = vadd.f32 %v828, 1e-05
        %v863 = vadd.f32 %v829, 1e-05
        %v864 = vadd.f32 %v830, 1e-05
        %v865 = vadd.f32 %v831, 1e-05
        %v866 = vadd.f32 %v832, 1e-05
        %v867 = vadd.f32 %v833, 1e-05
        %v868 = vadd.f32 %v834, 1e-05
        %v869 = vadd.f32 %v835, 1e-05
        %v870 = vadd.f32 %v836, 1e-05
        %v871 = vadd.f32 %v837, 1e-05
        %v872 = vadd.f32 %v838, 1e-05
        %v873 = vadd.f32 %v839, 1e-05
        %v874 = vadd.f32 %v840, 1e-05
        %v875 = vadd.f32 %v841, 1e-05
        %v876 = vadd.f32 %v842, 1e-05
        %v877 = vadd.f32 %v843, 1e-05
        %v878 = vrsqrt.pop %v861
        %v879 = vrsqrt.pop %v862
        %v880 = vrsqrt.pop %v863
        %v881 = vrsqrt.pop %v864
        %v882 = vrsqrt.pop %v865
        %v883 = vrsqrt.pop %v866
        %v884 = vrsqrt.pop %v867
        %v885 = vrsqrt.pop %v868
        %v886 = vrsqrt.pop %v869
        %v887 = vrsqrt.pop %v870
        %v888 = vrsqrt.pop %v871
        %v889 = vrsqrt.pop %v872
        %v890 = vrsqrt.pop %v873
        %v891 = vrsqrt.pop %v874
        %v892 = vrsqrt.pop %v875
        %v893 = vrsqrt.pop %v876
        %v894 = vrsqrt.pop %v877
        %v895 = vmul.f32 %v844, %v878
        %v896 = vmul.f32 %v845, %v879
        %v897 = vmul.f32 %v846, %v880
        %v898 = vmul.f32 %v847, %v881
        %v899 = vmul.f32 %v848, %v882
        %v900 = vmul.f32 %v849, %v883
        %v901 = vmul.f32 %v850, %v884
        %v902 = vmul.f32 %v851, %v885
        %v903 = vmul.f32 %v852, %v886
        %v904 = vmul.f32 %v853, %v887
        %v905 = vmul.f32 %v854, %v888
        %v906 = vmul.f32 %v855, %v889
        %v907 = vmul.f32 %v856, %v890
        %v908 = vmul.f32 %v857, %v891
        %v909 = vmul.f32 %v858, %v892
        %v910 = vmul.f32 %v859, %v893
        %v911 = vmul.f32 %v860, %v894
        %v913 = vlaneseq
        %v914 = vshrl.u32 %v913, 7
        %v915 = vsub.s32 0, %v914
        %v916 = vrot.slane %v374, %v915
        %v918 = vmul.f32 %v895, %v916
        %v919 = vmul.f32 %v896, %v916
        %v920 = vmul.f32 %v897, %v916
        %v921 = vmul.f32 %v898, %v916
        %v922 = vmul.f32 %v899, %v916
        %v923 = vmul.f32 %v900, %v916
        %v924 = vmul.f32 %v901, %v916
        %v925 = vmul.f32 %v902, %v916
        %v926 = vmul.f32 %v903, %v916
        %v927 = vmul.f32 %v904, %v916
        %v928 = vmul.f32 %v905, %v916
        %v929 = vmul.f32 %v906, %v916
        %v930 = vmul.f32 %v907, %v916
        %v931 = vmul.f32 %v908, %v916
        %v932 = vmul.f32 %v909, %v916
        %v933 = vmul.f32 %v910, %v916
        %v934 = vmul.f32 %v911, %v916
        %v936 = vlaneseq
        %v937 = vshrl.u32 %v936, 7
        %v938 = vsub.s32 0, %v937
        %v939 = vrot.slane %v375, %v938
        %v941 = vadd.f32 %v918, %v939
        %v942 = vadd.f32 %v919, %v939
        %v943 = vadd.f32 %v920, %v939
        %v944 = vadd.f32 %v921, %v939
        %v945 = vadd.f32 %v922, %v939
        %v946 = vadd.f32 %v923, %v939
        %v947 = vadd.f32 %v924, %v939
        %v948 = vadd.f32 %v925, %v939
        %v949 = vadd.f32 %v926, %v939
        %v950 = vadd.f32 %v927, %v939
        %v951 = vadd.f32 %v928, %v939
        %v952 = vadd.f32 %v929, %v939
        %v953 = vadd.f32 %v930, %v939
        %v954 = vadd.f32 %v931, %v939
        %v955 = vadd.f32 %v932, %v939
        %v956 = vadd.f32 %v933, %v939
        %v957 = vadd.f32 %v934, %v939
        %v958 = vlaneseq
        %v959 = vshrl.u32 %v958, 7
        %v960 = vadd.s32 %v959, 8
        %v961 = vadd.s32 %v959, 16
        %v962 = vadd.s32 %v959, 24
        %v963 = vadd.s32 %v959, 32
        %v964 = vadd.s32 %v959, 40
        %v965 = vadd.s32 %v959, 48
        %v966 = vadd.s32 %v959, 56
        %v967 = vadd.s32 %v959, 64
        %v968 = vadd.s32 %v959, 72
        %v969 = vadd.s32 %v959, 80
        %v970 = vadd.s32 %v959, 88
        %v971 = vadd.s32 %v959, 96
        %v972 = vadd.s32 %v959, 104
        %v973 = vadd.s32 %v959, 112
        %v974 = vadd.s32 %v959, 120
        %v975 = vadd.s32 %v959, 128
        %vm976 = vcmp.ge.s32.totalorder %v959, 1
        %vm977 = vcmp.ge.s32.totalorder %v960, 1
        %vm978 = vcmp.ge.s32.totalorder %v961, 1
        %vm979 = vcmp.ge.s32.totalorder %v962, 1
        %vm980 = vcmp.ge.s32.totalorder %v963, 1
        %vm981 = vcmp.ge.s32.totalorder %v964, 1
        %vm982 = vcmp.ge.s32.totalorder %v965, 1
        %vm983 = vcmp.ge.s32.totalorder %v966, 1
        %vm984 = vcmp.ge.s32.totalorder %v967, 1
        %vm985 = vcmp.ge.s32.totalorder %v968, 1
        %vm986 = vcmp.ge.s32.totalorder %v969, 1
        %vm987 = vcmp.ge.s32.totalorder %v970, 1
        %vm988 = vcmp.ge.s32.totalorder %v971, 1
        %vm989 = vcmp.ge.s32.totalorder %v972, 1
        %vm990 = vcmp.ge.s32.totalorder %v973, 1
        %vm991 = vcmp.ge.s32.totalorder %v974, 1
        %vm992 = vcmp.ge.s32.totalorder %v975, 1
        %vm993 = vcmp.lt.s32.totalorder %v959, 17
        %vm994 = vcmp.lt.s32.totalorder %v960, 17
        %vm995 = vcmp.lt.s32.totalorder %v961, 17
        %vm996 = vcmp.lt.s32.totalorder %v962, 17
        %vm997 = vcmp.lt.s32.totalorder %v963, 17
        %vm998 = vcmp.lt.s32.totalorder %v964, 17
        %vm999 = vcmp.lt.s32.totalorder %v965, 17
        %vm1000 = vcmp.lt.s32.totalorder %v966, 17
        %vm1001 = vcmp.lt.s32.totalorder %v967, 17
        %vm1002 = vcmp.lt.s32.totalorder %v968, 17
        %vm1003 = vcmp.lt.s32.totalorder %v969, 17
        %vm1004 = vcmp.lt.s32.totalorder %v970, 17
        %vm1005 = vcmp.lt.s32.totalorder %v971, 17
        %vm1006 = vcmp.lt.s32.totalorder %v972, 17
        %vm1007 = vcmp.lt.s32.totalorder %v973, 17
        %vm1008 = vcmp.lt.s32.totalorder %v974, 17
        %vm1009 = vcmp.lt.s32.totalorder %v975, 17
        %vm1010 = vmand %vm976, %vm993
        %vm1011 = vmand %vm977, %vm994
        %vm1012 = vmand %vm978, %vm995
        %vm1013 = vmand %vm979, %vm996
        %vm1014 = vmand %vm980, %vm997
        %vm1015 = vmand %vm981, %vm998
        %vm1016 = vmand %vm982, %vm999
        %vm1017 = vmand %vm983, %vm1000
        %vm1018 = vmand %vm984, %vm1001
        %vm1019 = vmand %vm985, %vm1002
        %vm1020 = vmand %vm986, %vm1003
        %vm1021 = vmand %vm987, %vm1004
        %vm1022 = vmand %vm988, %vm1005
        %vm1023 = vmand %vm989, %vm1006
        %vm1024 = vmand %vm990, %vm1007
        %vm1025 = vmand %vm991, %vm1008
        %vm1026 = vmand %vm992, %vm1009
        %v1027 = vsel %vm1010, 1, 0
        %v1028 = vsel %vm1011, 1, 0
        %v1029 = vsel %vm1012, 1, 0
        %v1030 = vsel %vm1013, 1, 0
        %v1031 = vsel %vm1014, 1, 0
        %v1032 = vsel %vm1015, 1, 0
        %v1033 = vsel %vm1016, 1, 0
        %v1034 = vsel %vm1017, 1, 0
        %v1035 = vsel %vm1018, 1, 0
        %v1036 = vsel %vm1019, 1, 0
        %v1037 = vsel %vm1020, 1, 0
        %v1038 = vsel %vm1021, 1, 0
        %v1039 = vsel %vm1022, 1, 0
        %v1040 = vsel %vm1023, 1, 0
        %v1041 = vsel %vm1024, 1, 0
        %v1042 = vsel %vm1025, 1, 0
        %v1043 = vsel %vm1026, 1, 0
        %v1044 = vcvt.s32.f32 %v1027
        %v1045 = vcvt.s32.f32 %v1028
        %v1046 = vcvt.s32.f32 %v1029
        %v1047 = vcvt.s32.f32 %v1030
        %v1048 = vcvt.s32.f32 %v1031
        %v1049 = vcvt.s32.f32 %v1032
        %v1050 = vcvt.s32.f32 %v1033
        %v1051 = vcvt.s32.f32 %v1034
        %v1052 = vcvt.s32.f32 %v1035
        %v1053 = vcvt.s32.f32 %v1036
        %v1054 = vcvt.s32.f32 %v1037
        %v1055 = vcvt.s32.f32 %v1038
        %v1056 = vcvt.s32.f32 %v1039
        %v1057 = vcvt.s32.f32 %v1040
        %v1058 = vcvt.s32.f32 %v1041
        %v1059 = vcvt.s32.f32 %v1042
        %v1060 = vcvt.s32.f32 %v1043
        %v1061 = vmul.f32 %v941, %v1044
        %v1062 = vmul.f32 %v942, %v1045
        %v1063 = vmul.f32 %v943, %v1046
        %v1064 = vmul.f32 %v944, %v1047
        %v1065 = vmul.f32 %v945, %v1048
        %v1066 = vmul.f32 %v946, %v1049
        %v1067 = vmul.f32 %v947, %v1050
        %v1068 = vmul.f32 %v948, %v1051
        %v1069 = vmul.f32 %v949, %v1052
        %v1070 = vmul.f32 %v950, %v1053
        %v1071 = vmul.f32 %v951, %v1054
        %v1072 = vmul.f32 %v952, %v1055
        %v1073 = vmul.f32 %v953, %v1056
        %v1074 = vmul.f32 %v954, %v1057
        %v1075 = vmul.f32 %v955, %v1058
        %v1076 = vmul.f32 %v956, %v1059
        %v1077 = vmul.f32 %v957, %v1060
        %v1095 = vrot.slane %v1061, 1
        %v1096 = vrot.slane %v1062, 1
        %v1097 = vsel %vm406, %v1095, %v1096
        %v1098 = vrot.slane %v1063, 1
        %v1099 = vsel %vm406, %v1096, %v1098
        %v1100 = vrot.slane %v1064, 1
        %v1101 = vsel %vm406, %v1098, %v1100
        %v1102 = vrot.slane %v1065, 1
        %v1103 = vsel %vm406, %v1100, %v1102
        %v1104 = vrot.slane %v1066, 1
        %v1105 = vsel %vm406, %v1102, %v1104
        %v1106 = vrot.slane %v1067, 1
        %v1107 = vsel %vm406, %v1104, %v1106
        %v1108 = vrot.slane %v1068, 1
        %v1109 = vsel %vm406, %v1106, %v1108
        %v1110 = vrot.slane %v1069, 1
        %v1111 = vsel %vm406, %v1108, %v1110
        %v1112 = vrot.slane %v1070, 1
        %v1113 = vsel %vm406, %v1110, %v1112
        %v1114 = vrot.slane %v1071, 1
        %v1115 = vsel %vm406, %v1112, %v1114
        %v1116 = vrot.slane %v1072, 1
        %v1117 = vsel %vm406, %v1114, %v1116
        %v1118 = vrot.slane %v1073, 1
        %v1119 = vsel %vm406, %v1116, %v1118
        %v1120 = vrot.slane %v1074, 1
        %v1121 = vsel %vm406, %v1118, %v1120
        %v1122 = vrot.slane %v1075, 1
        %v1123 = vsel %vm406, %v1120, %v1122
        %v1124 = vrot.slane %v1076, 1
        %v1125 = vsel %vm406, %v1122, %v1124
        %v1126 = vrot.slane %v1077, 1
        %v1127 = vsel %vm406, %v1124, %v1126
        %1128 = vrot.lane.b32.xlu0 %v1097, 32
        %v1129 = vpop.permute.xlu0 %1128
        %1130 = vrot.lane.b32.xlu0 %v1099, 32
        %v1131 = vpop.permute.xlu0 %1130
        %1132 = vrot.lane.b32.xlu0 %v1101, 32
        %v1133 = vpop.permute.xlu0 %1132
        %1134 = vrot.lane.b32.xlu0 %v1103, 32
        %v1135 = vpop.permute.xlu0 %1134
        %1136 = vrot.lane.b32.xlu0 %v1105, 32
        %v1137 = vpop.permute.xlu0 %1136
        %1138 = vrot.lane.b32.xlu0 %v1107, 32
        %v1139 = vpop.permute.xlu0 %1138
        %1140 = vrot.lane.b32.xlu0 %v1109, 32
        %v1141 = vpop.permute.xlu0 %1140
        %1142 = vrot.lane.b32.xlu0 %v1111, 32
        %v1143 = vpop.permute.xlu0 %1142
        %1144 = vrot.lane.b32.xlu0 %v1113, 32
        %v1145 = vpop.permute.xlu0 %1144
        %1146 = vrot.lane.b32.xlu0 %v1115, 32
        %v1147 = vpop.permute.xlu0 %1146
        %1148 = vrot.lane.b32.xlu0 %v1117, 32
        %v1149 = vpop.permute.xlu0 %1148
        %1150 = vrot.lane.b32.xlu0 %v1119, 32
        %v1151 = vpop.permute.xlu0 %1150
        %1152 = vrot.lane.b32.xlu0 %v1121, 32
        %v1153 = vpop.permute.xlu0 %1152
        %1154 = vrot.lane.b32.xlu0 %v1123, 32
        %v1155 = vpop.permute.xlu0 %1154
        %1156 = vrot.lane.b32.xlu0 %v1125, 32
        %v1157 = vpop.permute.xlu0 %1156
        %1158 = vrot.lane.b32.xlu0 %v1127, 32
        %v1159 = vpop.permute.xlu0 %1158
        %v1176 = vrot.slane %v1061, 2
        %v1177 = vrot.slane %v1062, 2
        %v1178 = vsel %vm427, %v1176, %v1177
        %v1179 = vrot.slane %v1063, 2
        %v1180 = vsel %vm427, %v1177, %v1179
        %v1181 = vrot.slane %v1064, 2
        %v1182 = vsel %vm427, %v1179, %v1181
        %v1183 = vrot.slane %v1065, 2
        %v1184 = vsel %vm427, %v1181, %v1183
        %v1185 = vrot.slane %v1066, 2
        %v1186 = vsel %vm427, %v1183, %v1185
        %v1187 = vrot.slane %v1067, 2
        %v1188 = vsel %vm427, %v1185, %v1187
        %v1189 = vrot.slane %v1068, 2
        %v1190 = vsel %vm427, %v1187, %v1189
        %v1191 = vrot.slane %v1069, 2
        %v1192 = vsel %vm427, %v1189, %v1191
        %v1193 = vrot.slane %v1070, 2
        %v1194 = vsel %vm427, %v1191, %v1193
        %v1195 = vrot.slane %v1071, 2
        %v1196 = vsel %vm427, %v1193, %v1195
        %v1197 = vrot.slane %v1072, 2
        %v1198 = vsel %vm427, %v1195, %v1197
        %v1199 = vrot.slane %v1073, 2
        %v1200 = vsel %vm427, %v1197, %v1199
        %v1201 = vrot.slane %v1074, 2
        %v1202 = vsel %vm427, %v1199, %v1201
        %v1203 = vrot.slane %v1075, 2
        %v1204 = vsel %vm427, %v1201, %v1203
        %v1205 = vrot.slane %v1076, 2
        %v1206 = vsel %vm427, %v1203, %v1205
        %v1207 = vrot.slane %v1077, 2
        %v1208 = vsel %vm427, %v1205, %v1207
        %1209 = vrot.lane.b32.xlu0 %v1178, 64
        %v1210 = vpop.permute.xlu0 %1209
        %1211 = vrot.lane.b32.xlu0 %v1180, 64
        %v1212 = vpop.permute.xlu0 %1211
        %1213 = vrot.lane.b32.xlu0 %v1182, 64
        %v1214 = vpop.permute.xlu0 %1213
        %1215 = vrot.lane.b32.xlu0 %v1184, 64
        %v1216 = vpop.permute.xlu0 %1215
        %1217 = vrot.lane.b32.xlu0 %v1186, 64
        %v1218 = vpop.permute.xlu0 %1217
        %1219 = vrot.lane.b32.xlu0 %v1188, 64
        %v1220 = vpop.permute.xlu0 %1219
        %1221 = vrot.lane.b32.xlu0 %v1190, 64
        %v1222 = vpop.permute.xlu0 %1221
        %1223 = vrot.lane.b32.xlu0 %v1192, 64
        %v1224 = vpop.permute.xlu0 %1223
        %1225 = vrot.lane.b32.xlu0 %v1194, 64
        %v1226 = vpop.permute.xlu0 %1225
        %1227 = vrot.lane.b32.xlu0 %v1196, 64
        %v1228 = vpop.permute.xlu0 %1227
        %1229 = vrot.lane.b32.xlu0 %v1198, 64
        %v1230 = vpop.permute.xlu0 %1229
        %1231 = vrot.lane.b32.xlu0 %v1200, 64
        %v1232 = vpop.permute.xlu0 %1231
        %1233 = vrot.lane.b32.xlu0 %v1202, 64
        %v1234 = vpop.permute.xlu0 %1233
        %1235 = vrot.lane.b32.xlu0 %v1204, 64
        %v1236 = vpop.permute.xlu0 %1235
        %1237 = vrot.lane.b32.xlu0 %v1206, 64
        %v1238 = vpop.permute.xlu0 %1237
        %1239 = vrot.lane.b32.xlu0 %v1208, 64
        %v1240 = vpop.permute.xlu0 %1239
        %v1257 = vsel %vm448, %v1061, %v1129
        %v1258 = vsel %vm448, %v1062, %v1131
        %v1259 = vsel %vm448, %v1063, %v1133
        %v1260 = vsel %vm448, %v1064, %v1135
        %v1261 = vsel %vm448, %v1065, %v1137
        %v1262 = vsel %vm448, %v1066, %v1139
        %v1263 = vsel %vm448, %v1067, %v1141
        %v1264 = vsel %vm448, %v1068, %v1143
        %v1265 = vsel %vm448, %v1069, %v1145
        %v1266 = vsel %vm448, %v1070, %v1147
        %v1267 = vsel %vm448, %v1071, %v1149
        %v1268 = vsel %vm448, %v1072, %v1151
        %v1269 = vsel %vm448, %v1073, %v1153
        %v1270 = vsel %vm448, %v1074, %v1155
        %v1271 = vsel %vm448, %v1075, %v1157
        %v1272 = vsel %vm448, %v1076, %v1159
        %v1273 = vsel %vm453, %v1257, %v1210
        %v1274 = vsel %vm453, %v1258, %v1212
        %v1275 = vsel %vm453, %v1259, %v1214
        %v1276 = vsel %vm453, %v1260, %v1216
        %v1277 = vsel %vm453, %v1261, %v1218
        %v1278 = vsel %vm453, %v1262, %v1220
        %v1279 = vsel %vm453, %v1263, %v1222
        %v1280 = vsel %vm453, %v1264, %v1224
        %v1281 = vsel %vm453, %v1265, %v1226
        %v1282 = vsel %vm453, %v1266, %v1228
        %v1283 = vsel %vm453, %v1267, %v1230
        %v1284 = vsel %vm453, %v1268, %v1232
        %v1285 = vsel %vm453, %v1269, %v1234
        %v1286 = vsel %vm453, %v1270, %v1236
        %v1287 = vsel %vm453, %v1271, %v1238
        %v1288 = vsel %vm453, %v1272, %v1240
        %v1289 = vld [vmem:[%s6] sm:$0xff]
        %v1290 = vld [vmem:[%s6 + $0x8] sm:$0xff]
        %v1291 = vld [vmem:[%s6 + $0x10] sm:$0xff]
        %v1292 = vld [vmem:[%s6 + $0x18] sm:$0xff]
        %v1293 = vld [vmem:[%s6 + $0x20] sm:$0xff]
        %v1294 = vld [vmem:[%s6 + $0x28] sm:$0xff]
        %v1295 = vld [vmem:[%s6 + $0x30] sm:$0xff]
        %v1296 = vld [vmem:[%s6 + $0x38] sm:$0xff]
        %v1297 = vld [vmem:[%s6 + $0x40] sm:$0xff]
        %v1298 = vld [vmem:[%s6 + $0x48] sm:$0xff]
        %v1299 = vld [vmem:[%s6 + $0x50] sm:$0xff]
        %v1300 = vld [vmem:[%s6 + $0x58] sm:$0xff]
        %v1302 = vlaneseq
        %v1303 = vshrl.u32 %v1302, 7
        %v1304 = vsub.s32 0, %v1303
        %v1305 = vrot.slane %v376, %v1304
        %v1308 = vsel %vm476, %v1273, 0
        %v1311 = vsel %vm476, %v1274, 0
        %v1314 = vsel %vm476, %v1275, 0
        %v1317 = vsel %vm476, %v1276, 0
        %v1320 = vsel %vm476, %v1277, 0
        %v1323 = vsel %vm476, %v1278, 0
        %v1326 = vsel %vm476, %v1279, 0
        %v1329 = vsel %vm476, %v1280, 0
        %v1332 = vsel %vm476, %v1281, 0
        %v1335 = vsel %vm476, %v1282, 0
        %v1338 = vsel %vm476, %v1283, 0
        %v1341 = vsel %vm476, %v1284, 0
        %v1344 = vsel %vm476, %v1285, 0
        %v1347 = vsel %vm476, %v1286, 0
        %v1350 = vsel %vm476, %v1287, 0
        %v1353 = vsel %vm476, %v1288, 0
        %1355 = vmatprep.subr.mxu0 0.0
        %1356 = vmatpush1.msra.mxu0 %v1289
        %1357 = vmatprep.subr.mxu0 0.0
        %1358 = vmatpush1.msra.mxu0 %v1290
        %1359 = vmatprep.subr.mxu0 0.0
        %1360 = vmatpush1.msra.mxu0 %v1291
        %1361 = vmatprep.subr.mxu0 0.0
        %1362 = vmatpush1.msra.mxu0 %v1292
        %1363 = vmatprep.subr.mxu0 0.0
        %1364 = vmatpush1.msra.mxu0 %v1293
        %1365 = vmatprep.subr.mxu0 0.0
        %1366 = vmatpush1.msra.mxu0 %v1294
        %1367 = vmatprep.subr.mxu0 0.0
        %1368 = vmatpush1.msra.mxu0 %v1295
        %1369 = vmatprep.subr.mxu0 0.0
        %1370 = vmatpush1.msra.mxu0 %v1296
        %1371 = vmatprep.subr.mxu0 0.0
        %1372 = vmatpush1.msra.mxu0 %v1297
        %1373 = vmatprep.subr.mxu0 0.0
        %1374 = vmatpush1.msra.mxu0 %v1298
        %1375 = vmatprep.subr.mxu0 0.0
        %1376 = vmatpush1.msra.mxu0 %v1299
        %1377 = vmatprep.subr.mxu0 0.0
        %1378 = vmatpush1.msra.mxu0 %v1300
        %1379 = vmatprep.subr.mxu0 0.0
        %1380 = vmatpush1.msra.mxu0 0.0
        %1381 = vmatprep.subr.mxu0 0.0
        %1382 = vmatpush1.msra.mxu0 0.0
        %1383 = vmatprep.subr.mxu0 0.0
        %1384 = vmatpush1.msra.mxu0 0.0
        %1385 = vmatprep.subr.mxu0 0.0
        %1386 = vmatpush1.msra.mxu0 0.0
        %1387 = vmatprep.subr.mxu0 0.0
        %1388 = vmatpush1.msra.mxu0 0.0
        %1389 = vmatprep.subr.mxu0 0.0
        %1390 = vmatpush1.msra.mxu0 0.0
        %1391 = vmatprep.subr.mxu0 0.0
        %1392 = vmatpush1.msra.mxu0 0.0
        %1393 = vmatprep.subr.mxu0 0.0
        %1394 = vmatpush1.msra.mxu0 0.0
        %1395 = vmatprep.subr.mxu0 0.0
        %1396 = vmatpush1.msra.mxu0 0.0
        %1397 = vmatprep.subr.mxu0 0.0
        %1398 = vmatpush1.msra.mxu0 0.0
        %1399 = vmatprep.subr.mxu0 0.0
        %1400 = vmatpush1.msra.mxu0 0.0
        %1401 = vmatprep.subr.mxu0 0.0
        %1402 = vmatpush1.msra.mxu0 0.0
        %1403 = vmatprep.subr.mxu0 0.0
        %1404 = vmatpush1.msra.mxu0 0.0
        %1405 = vmatprep.subr.mxu0 0.0
        %1406 = vmatpush1.msra.mxu0 0.0
        %1407 = vmatprep.subr.mxu0 0.0
        %1408 = vmatpush1.msra.mxu0 0.0
        %1409 = vmatprep.subr.mxu0 0.0
        %1410 = vmatpush1.msra.mxu0 0.0
        %1411 = vmatprep.subr.mxu0 0.0
        %1412 = vmatpush1.msra.mxu0 0.0
        %1413 = vmatprep.subr.mxu0 0.0
        %1414 = vmatpush1.msra.mxu0 0.0
        %1415 = vmatprep.subr.mxu0 0.0
        %1416 = vmatpush1.msra.mxu0 0.0
        %1417 = vmatprep.subr.mxu0 0.0
        %1418 = vmatpush1.msra.mxu0 0.0
        %1419 = vmatprep.mubr.f32.mxu0 0.0
        %1420 = vmatmul.mubr.f32.gmra.mrb[0].mxu0 %v1308
        %v1421 = vpop.f32.mrb[0].mxu0
        %v1422 = vadd.f32 %v1305, %v1421
        %v1423 = vpop.f32.mrb[0].mxu0
        %1424 = vmatprep.mubr.f32.mxu0 0.0
        %1425 = vmatmul.mubr.f32.gmra.mrb[0].mxu0 %v1311
        %v1426 = vpop.f32.mrb[0].mxu0
        %v1427 = vadd.f32 %v1305, %v1426
        %v1428 = vpop.f32.mrb[0].mxu0
        %1429 = vmatprep.mubr.f32.mxu0 0.0
        %1430 = vmatmul.mubr.f32.gmra.mrb[0].mxu0 %v1314
        %v1431 = vpop.f32.mrb[0].mxu0
        %v1432 = vadd.f32 %v1305, %v1431
        %v1433 = vpop.f32.mrb[0].mxu0
        %1434 = vmatprep.mubr.f32.mxu0 0.0
        %1435 = vmatmul.mubr.f32.gmra.mrb[0].mxu0 %v1317
        %v1436 = vpop.f32.mrb[0].mxu0
        %v1437 = vadd.f32 %v1305, %v1436
        %v1438 = vpop.f32.mrb[0].mxu0
        %1439 = vmatprep.mubr.f32.mxu0 0.0
        %1440 = vmatmul.mubr.f32.gmra.mrb[0].mxu0 %v1320
        %v1441 = vpop.f32.mrb[0].mxu0
        %v1442 = vadd.f32 %v1305, %v1441
        %v1443 = vpop.f32.mrb[0].mxu0
        %1444 = vmatprep.mubr.f32.mxu0 0.0
        %1445 = vmatmul.mubr.f32.gmra.mrb[0].mxu0 %v1323
        %v1446 = vpop.f32.mrb[0].mxu0
        %v1447 = vadd.f32 %v1305, %v1446
        %v1448 = vpop.f32.mrb[0].mxu0
        %1449 = vmatprep.mubr.f32.mxu0 0.0
        %1450 = vmatmul.mubr.f32.gmra.mrb[0].mxu0 %v1326
        %v1451 = vpop.f32.mrb[0].mxu0
        %v1452 = vadd.f32 %v1305, %v1451
        %v1453 = vpop.f32.mrb[0].mxu0
        %1454 = vmatprep.mubr.f32.mxu0 0.0
        %1455 = vmatmul.mubr.f32.gmra.mrb[0].mxu0 %v1329
        %v1456 = vpop.f32.mrb[0].mxu0
        %v1457 = vadd.f32 %v1305, %v1456
        %v1458 = vpop.f32.mrb[0].mxu0
        %1459 = vmatprep.mubr.f32.mxu0 0.0
        %1460 = vmatmul.mubr.f32.gmra.mrb[0].mxu0 %v1332
        %v1461 = vpop.f32.mrb[0].mxu0
        %v1462 = vadd.f32 %v1305, %v1461
        %v1463 = vpop.f32.mrb[0].mxu0
        %1464 = vmatprep.mubr.f32.mxu0 0.0
        %1465 = vmatmul.mubr.f32.gmra.mrb[0].mxu0 %v1335
        %v1466 = vpop.f32.mrb[0].mxu0
        %v1467 = vadd.f32 %v1305, %v1466
        %v1468 = vpop.f32.mrb[0].mxu0
        %1469 = vmatprep.mubr.f32.mxu0 0.0
        %1470 = vmatmul.mubr.f32.gmra.mrb[0].mxu0 %v1338
        %v1471 = vpop.f32.mrb[0].mxu0
        %v1472 = vadd.f32 %v1305, %v1471
        %v1473 = vpop.f32.mrb[0].mxu0
        %1474 = vmatprep.mubr.f32.mxu0 0.0
        %1475 = vmatmul.mubr.f32.gmra.mrb[0].mxu0 %v1341
        %v1476 = vpop.f32.mrb[0].mxu0
        %v1477 = vadd.f32 %v1305, %v1476
        %v1478 = vpop.f32.mrb[0].mxu0
        %1479 = vmatprep.mubr.f32.mxu0 0.0
        %1480 = vmatmul.mubr.f32.gmra.mrb[0].mxu0 %v1344
        %v1481 = vpop.f32.mrb[0].mxu0
        %v1482 = vadd.f32 %v1305, %v1481
        %v1483 = vpop.f32.mrb[0].mxu0
        %1484 = vmatprep.mubr.f32.mxu0 0.0
        %1485 = vmatmul.mubr.f32.gmra.mrb[0].mxu0 %v1347
        %v1486 = vpop.f32.mrb[0].mxu0
        %v1487 = vadd.f32 %v1305, %v1486
        %v1488 = vpop.f32.mrb[0].mxu0
        %1489 = vmatprep.mubr.f32.mxu0 0.0
        %1490 = vmatmul.mubr.f32.gmra.mrb[0].mxu0 %v1350
        %v1491 = vpop.f32.mrb[0].mxu0
        %v1492 = vadd.f32 %v1305, %v1491
        %v1493 = vpop.f32.mrb[0].mxu0
        %1494 = vmatprep.mubr.f32.mxu0 0.0
        %1495 = vmatmul.mubr.f32.gmra.mrb[0].mxu0 %v1353
        %v1496 = vpop.f32.mrb[0].mxu0
        %v1497 = vadd.f32 %v1305, %v1496
        %v1498 = vpop.f32.mrb[0].mxu0
        %1499 = vdwg.mxu0
        %v1500 = vmax.f32 %v1422, 0.0
        %v1501 = vmax.f32 %v1427, 0.0
        %v1502 = vmax.f32 %v1432, 0.0
        %v1503 = vmax.f32 %v1437, 0.0
        %v1504 = vmax.f32 %v1442, 0.0
        %v1505 = vmax.f32 %v1447, 0.0
        %v1506 = vmax.f32 %v1452, 0.0
        %v1507 = vmax.f32 %v1457, 0.0
        %v1508 = vmax.f32 %v1462, 0.0
        %v1509 = vmax.f32 %v1467, 0.0
        %v1510 = vmax.f32 %v1472, 0.0
        %v1511 = vmax.f32 %v1477, 0.0
        %v1512 = vmax.f32 %v1482, 0.0
        %v1513 = vmax.f32 %v1487, 0.0
        %v1514 = vmax.f32 %v1492, 0.0
        %v1515 = vmax.f32 %v1497, 0.0
        %v1516 = vsel %vm448, %v1500, 0.0
        %1517 = vadd.xlane.f32.xlu0 %v1516
        %v1518 = vpop.xlane.xlu0 %1517
        %v1519 = vsel %vm448, %v1501, 0.0
        %1520 = vadd.xlane.f32.xlu0 %v1519
        %v1521 = vpop.xlane.xlu0 %1520
        %v1522 = vsel %vm448, %v1502, 0.0
        %1523 = vadd.xlane.f32.xlu0 %v1522
        %v1524 = vpop.xlane.xlu0 %1523
        %v1525 = vsel %vm448, %v1503, 0.0
        %1526 = vadd.xlane.f32.xlu0 %v1525
        %v1527 = vpop.xlane.xlu0 %1526
        %v1528 = vsel %vm448, %v1504, 0.0
        %1529 = vadd.xlane.f32.xlu0 %v1528
        %v1530 = vpop.xlane.xlu0 %1529
        %v1531 = vsel %vm448, %v1505, 0.0
        %1532 = vadd.xlane.f32.xlu0 %v1531
        %v1533 = vpop.xlane.xlu0 %1532
        %v1534 = vsel %vm448, %v1506, 0.0
        %1535 = vadd.xlane.f32.xlu0 %v1534
        %v1536 = vpop.xlane.xlu0 %1535
        %v1537 = vsel %vm448, %v1507, 0.0
        %1538 = vadd.xlane.f32.xlu0 %v1537
        %v1539 = vpop.xlane.xlu0 %1538
        %v1540 = vsel %vm448, %v1508, 0.0
        %1541 = vadd.xlane.f32.xlu0 %v1540
        %v1542 = vpop.xlane.xlu0 %1541
        %v1543 = vsel %vm448, %v1509, 0.0
        %1544 = vadd.xlane.f32.xlu0 %v1543
        %v1545 = vpop.xlane.xlu0 %1544
        %v1546 = vsel %vm448, %v1510, 0.0
        %1547 = vadd.xlane.f32.xlu0 %v1546
        %v1548 = vpop.xlane.xlu0 %1547
        %v1549 = vsel %vm448, %v1511, 0.0
        %1550 = vadd.xlane.f32.xlu0 %v1549
        %v1551 = vpop.xlane.xlu0 %1550
        %v1552 = vsel %vm448, %v1512, 0.0
        %1553 = vadd.xlane.f32.xlu0 %v1552
        %v1554 = vpop.xlane.xlu0 %1553
        %v1555 = vsel %vm448, %v1513, 0.0
        %1556 = vadd.xlane.f32.xlu0 %v1555
        %v1557 = vpop.xlane.xlu0 %1556
        %v1558 = vsel %vm448, %v1514, 0.0
        %1559 = vadd.xlane.f32.xlu0 %v1558
        %v1560 = vpop.xlane.xlu0 %1559
        %v1561 = vsel %vm448, %v1515, 0.0
        %1562 = vadd.xlane.f32.xlu0 %v1561
        %v1563 = vpop.xlane.xlu0 %1562
        %v1564 = vmul.f32 %v1500, %v1500
        %v1565 = vmul.f32 %v1501, %v1501
        %v1566 = vmul.f32 %v1502, %v1502
        %v1567 = vmul.f32 %v1503, %v1503
        %v1568 = vmul.f32 %v1504, %v1504
        %v1569 = vmul.f32 %v1505, %v1505
        %v1570 = vmul.f32 %v1506, %v1506
        %v1571 = vmul.f32 %v1507, %v1507
        %v1572 = vmul.f32 %v1508, %v1508
        %v1573 = vmul.f32 %v1509, %v1509
        %v1574 = vmul.f32 %v1510, %v1510
        %v1575 = vmul.f32 %v1511, %v1511
        %v1576 = vmul.f32 %v1512, %v1512
        %v1577 = vmul.f32 %v1513, %v1513
        %v1578 = vmul.f32 %v1514, %v1514
        %v1579 = vmul.f32 %v1515, %v1515
        %v1580 = vsel %vm448, %v1564, 0.0
        %1581 = vadd.xlane.f32.xlu0 %v1580
        %v1582 = vpop.xlane.xlu0 %1581
        %v1583 = vsel %vm448, %v1565, 0.0
        %1584 = vadd.xlane.f32.xlu0 %v1583
        %v1585 = vpop.xlane.xlu0 %1584
        %v1586 = vsel %vm448, %v1566, 0.0
        %1587 = vadd.xlane.f32.xlu0 %v1586
        %v1588 = vpop.xlane.xlu0 %1587
        %v1589 = vsel %vm448, %v1567, 0.0
        %1590 = vadd.xlane.f32.xlu0 %v1589
        %v1591 = vpop.xlane.xlu0 %1590
        %v1592 = vsel %vm448, %v1568, 0.0
        %1593 = vadd.xlane.f32.xlu0 %v1592
        %v1594 = vpop.xlane.xlu0 %1593
        %v1595 = vsel %vm448, %v1569, 0.0
        %1596 = vadd.xlane.f32.xlu0 %v1595
        %v1597 = vpop.xlane.xlu0 %1596
        %v1598 = vsel %vm448, %v1570, 0.0
        %1599 = vadd.xlane.f32.xlu0 %v1598
        %v1600 = vpop.xlane.xlu0 %1599
        %v1601 = vsel %vm448, %v1571, 0.0
        %1602 = vadd.xlane.f32.xlu0 %v1601
        %v1603 = vpop.xlane.xlu0 %1602
        %v1604 = vsel %vm448, %v1572, 0.0
        %1605 = vadd.xlane.f32.xlu0 %v1604
        %v1606 = vpop.xlane.xlu0 %1605
        %v1607 = vsel %vm448, %v1573, 0.0
        %1608 = vadd.xlane.f32.xlu0 %v1607
        %v1609 = vpop.xlane.xlu0 %1608
        %v1610 = vsel %vm448, %v1574, 0.0
        %1611 = vadd.xlane.f32.xlu0 %v1610
        %v1612 = vpop.xlane.xlu0 %1611
        %v1613 = vsel %vm448, %v1575, 0.0
        %1614 = vadd.xlane.f32.xlu0 %v1613
        %v1615 = vpop.xlane.xlu0 %1614
        %v1616 = vsel %vm448, %v1576, 0.0
        %1617 = vadd.xlane.f32.xlu0 %v1616
        %v1618 = vpop.xlane.xlu0 %1617
        %v1619 = vsel %vm448, %v1577, 0.0
        %1620 = vadd.xlane.f32.xlu0 %v1619
        %v1621 = vpop.xlane.xlu0 %1620
        %v1622 = vsel %vm448, %v1578, 0.0
        %1623 = vadd.xlane.f32.xlu0 %v1622
        %v1624 = vpop.xlane.xlu0 %1623
        %v1625 = vsel %vm448, %v1579, 0.0
        %1626 = vadd.xlane.f32.xlu0 %v1625
        %v1627 = vpop.xlane.xlu0 %1626
        %v1629 = vlaneseq
        %v1630 = vshrl.u32 %v1629, 7
        %v1631 = vsub.s32 0, %v1630
        %v1632 = vrot.slane %v377, %v1631
        %v1634 = vmul.f32 %v1500, %v1632
        %v1635 = vmul.f32 %v1501, %v1632
        %v1636 = vmul.f32 %v1502, %v1632
        %v1637 = vmul.f32 %v1503, %v1632
        %v1638 = vmul.f32 %v1504, %v1632
        %v1639 = vmul.f32 %v1505, %v1632
        %v1640 = vmul.f32 %v1506, %v1632
        %v1641 = vmul.f32 %v1507, %v1632
        %v1642 = vmul.f32 %v1508, %v1632
        %v1643 = vmul.f32 %v1509, %v1632
        %v1644 = vmul.f32 %v1510, %v1632
        %v1645 = vmul.f32 %v1511, %v1632
        %v1646 = vmul.f32 %v1512, %v1632
        %v1647 = vmul.f32 %v1513, %v1632
        %v1648 = vmul.f32 %v1514, %v1632
        %v1649 = vmul.f32 %v1515, %v1632
        %v1650 = vsel %vm448, %v1634, 0.0
        %1651 = vadd.xlane.f32.xlu0 %v1650
        %v1652 = vpop.xlane.xlu0 %1651
        %v1653 = vsel %vm448, %v1635, 0.0
        %1654 = vadd.xlane.f32.xlu0 %v1653
        %v1655 = vpop.xlane.xlu0 %1654
        %v1656 = vsel %vm448, %v1636, 0.0
        %1657 = vadd.xlane.f32.xlu0 %v1656
        %v1658 = vpop.xlane.xlu0 %1657
        %v1659 = vsel %vm448, %v1637, 0.0
        %1660 = vadd.xlane.f32.xlu0 %v1659
        %v1661 = vpop.xlane.xlu0 %1660
        %v1662 = vsel %vm448, %v1638, 0.0
        %1663 = vadd.xlane.f32.xlu0 %v1662
        %v1664 = vpop.xlane.xlu0 %1663
        %v1665 = vsel %vm448, %v1639, 0.0
        %1666 = vadd.xlane.f32.xlu0 %v1665
        %v1667 = vpop.xlane.xlu0 %1666
        %v1668 = vsel %vm448, %v1640, 0.0
        %1669 = vadd.xlane.f32.xlu0 %v1668
        %v1670 = vpop.xlane.xlu0 %1669
        %v1671 = vsel %vm448, %v1641, 0.0
        %1672 = vadd.xlane.f32.xlu0 %v1671
        %v1673 = vpop.xlane.xlu0 %1672
        %v1674 = vsel %vm448, %v1642, 0.0
        %1675 = vadd.xlane.f32.xlu0 %v1674
        %v1676 = vpop.xlane.xlu0 %1675
        %v1677 = vsel %vm448, %v1643, 0.0
        %1678 = vadd.xlane.f32.xlu0 %v1677
        %v1679 = vpop.xlane.xlu0 %1678
        %v1680 = vsel %vm448, %v1644, 0.0
        %1681 = vadd.xlane.f32.xlu0 %v1680
        %v1682 = vpop.xlane.xlu0 %1681
        %v1683 = vsel %vm448, %v1645, 0.0
        %1684 = vadd.xlane.f32.xlu0 %v1683
        %v1685 = vpop.xlane.xlu0 %1684
        %v1686 = vsel %vm448, %v1646, 0.0
        %1687 = vadd.xlane.f32.xlu0 %v1686
        %v1688 = vpop.xlane.xlu0 %1687
        %v1689 = vsel %vm448, %v1647, 0.0
        %1690 = vadd.xlane.f32.xlu0 %v1689
        %v1691 = vpop.xlane.xlu0 %1690
        %v1692 = vsel %vm448, %v1648, 0.0
        %1693 = vadd.xlane.f32.xlu0 %v1692
        %v1694 = vpop.xlane.xlu0 %1693
        %v1695 = vsel %vm448, %v1649, 0.0
        %1696 = vadd.xlane.f32.xlu0 %v1695
        %v1697 = vpop.xlane.xlu0 %1696
        %v1698 = vmul.f32 %v1518, 0.03125
        %v1699 = vmul.f32 %v1521, 0.03125
        %v1700 = vmul.f32 %v1524, 0.03125
        %v1701 = vmul.f32 %v1527, 0.03125
        %v1702 = vmul.f32 %v1530, 0.03125
        %v1703 = vmul.f32 %v1533, 0.03125
        %v1704 = vmul.f32 %v1536, 0.03125
        %v1705 = vmul.f32 %v1539, 0.03125
        %v1706 = vmul.f32 %v1542, 0.03125
        %v1707 = vmul.f32 %v1545, 0.03125
        %v1708 = vmul.f32 %v1548, 0.03125
        %v1709 = vmul.f32 %v1551, 0.03125
        %v1710 = vmul.f32 %v1554, 0.03125
        %v1711 = vmul.f32 %v1557, 0.03125
        %v1712 = vmul.f32 %v1560, 0.03125
        %v1713 = vmul.f32 %v1563, 0.03125
        %v1714 = vmul.f32 %v1582, 0.03125
        %v1715 = vmul.f32 %v1585, 0.03125
        %v1716 = vmul.f32 %v1588, 0.03125
        %v1717 = vmul.f32 %v1591, 0.03125
        %v1718 = vmul.f32 %v1594, 0.03125
        %v1719 = vmul.f32 %v1597, 0.03125
        %v1720 = vmul.f32 %v1600, 0.03125
        %v1721 = vmul.f32 %v1603, 0.03125
        %v1722 = vmul.f32 %v1606, 0.03125
        %v1723 = vmul.f32 %v1609, 0.03125
        %v1724 = vmul.f32 %v1612, 0.03125
        %v1725 = vmul.f32 %v1615, 0.03125
        %v1726 = vmul.f32 %v1618, 0.03125
        %v1727 = vmul.f32 %v1621, 0.03125
        %v1728 = vmul.f32 %v1624, 0.03125
        %v1729 = vmul.f32 %v1627, 0.03125
        %v1730 = vmul.f32 %v1698, %v1698
        %v1731 = vmul.f32 %v1699, %v1699
        %v1732 = vmul.f32 %v1700, %v1700
        %v1733 = vmul.f32 %v1701, %v1701
        %v1734 = vmul.f32 %v1702, %v1702
        %v1735 = vmul.f32 %v1703, %v1703
        %v1736 = vmul.f32 %v1704, %v1704
        %v1737 = vmul.f32 %v1705, %v1705
        %v1738 = vmul.f32 %v1706, %v1706
        %v1739 = vmul.f32 %v1707, %v1707
        %v1740 = vmul.f32 %v1708, %v1708
        %v1741 = vmul.f32 %v1709, %v1709
        %v1742 = vmul.f32 %v1710, %v1710
        %v1743 = vmul.f32 %v1711, %v1711
        %v1744 = vmul.f32 %v1712, %v1712
        %v1745 = vmul.f32 %v1713, %v1713
        %v1746 = vsub.f32 %v1714, %v1730
        %v1747 = vsub.f32 %v1715, %v1731
        %v1748 = vsub.f32 %v1716, %v1732
        %v1749 = vsub.f32 %v1717, %v1733
        %v1750 = vsub.f32 %v1718, %v1734
        %v1751 = vsub.f32 %v1719, %v1735
        %v1752 = vsub.f32 %v1720, %v1736
        %v1753 = vsub.f32 %v1721, %v1737
        %v1754 = vsub.f32 %v1722, %v1738
        %v1755 = vsub.f32 %v1723, %v1739
        %v1756 = vsub.f32 %v1724, %v1740
        %v1757 = vsub.f32 %v1725, %v1741
        %v1758 = vsub.f32 %v1726, %v1742
        %v1759 = vsub.f32 %v1727, %v1743
        %v1760 = vsub.f32 %v1728, %v1744
        %v1761 = vsub.f32 %v1729, %v1745
        %v1762 = vadd.f32 %v1746, 1e-05
        %v1763 = vadd.f32 %v1747, 1e-05
        %v1764 = vadd.f32 %v1748, 1e-05
        %v1765 = vadd.f32 %v1749, 1e-05
        %v1766 = vadd.f32 %v1750, 1e-05
        %v1767 = vadd.f32 %v1751, 1e-05
        %v1768 = vadd.f32 %v1752, 1e-05
        %v1769 = vadd.f32 %v1753, 1e-05
        %v1770 = vadd.f32 %v1754, 1e-05
        %v1771 = vadd.f32 %v1755, 1e-05
        %v1772 = vadd.f32 %v1756, 1e-05
        %v1773 = vadd.f32 %v1757, 1e-05
        %v1774 = vadd.f32 %v1758, 1e-05
        %v1775 = vadd.f32 %v1759, 1e-05
        %v1776 = vadd.f32 %v1760, 1e-05
        %v1777 = vadd.f32 %v1761, 1e-05
        %v1778 = vrsqrt.pop %v1762
        %v1779 = vrsqrt.pop %v1763
        %v1780 = vrsqrt.pop %v1764
        %v1781 = vrsqrt.pop %v1765
        %v1782 = vrsqrt.pop %v1766
        %v1783 = vrsqrt.pop %v1767
        %v1784 = vrsqrt.pop %v1768
        %v1785 = vrsqrt.pop %v1769
        %v1786 = vrsqrt.pop %v1770
        %v1787 = vrsqrt.pop %v1771
        %v1788 = vrsqrt.pop %v1772
        %v1789 = vrsqrt.pop %v1773
        %v1790 = vrsqrt.pop %v1774
        %v1791 = vrsqrt.pop %v1775
        %v1792 = vrsqrt.pop %v1776
        %v1793 = vrsqrt.pop %v1777
        %v1794 = vstv %s388
        %v1795 = vmul.f32 %v1698, %v1794
        %v1796 = vmul.f32 %v1699, %v1794
        %v1797 = vmul.f32 %v1700, %v1794
        %v1798 = vmul.f32 %v1701, %v1794
        %v1799 = vmul.f32 %v1702, %v1794
        %v1800 = vmul.f32 %v1703, %v1794
        %v1801 = vmul.f32 %v1704, %v1794
        %v1802 = vmul.f32 %v1705, %v1794
        %v1803 = vmul.f32 %v1706, %v1794
        %v1804 = vmul.f32 %v1707, %v1794
        %v1805 = vmul.f32 %v1708, %v1794
        %v1806 = vmul.f32 %v1709, %v1794
        %v1807 = vmul.f32 %v1710, %v1794
        %v1808 = vmul.f32 %v1711, %v1794
        %v1809 = vmul.f32 %v1712, %v1794
        %v1810 = vmul.f32 %v1713, %v1794
        %v1811 = vsub.f32 %v1652, %v1795
        %v1812 = vsub.f32 %v1655, %v1796
        %v1813 = vsub.f32 %v1658, %v1797
        %v1814 = vsub.f32 %v1661, %v1798
        %v1815 = vsub.f32 %v1664, %v1799
        %v1816 = vsub.f32 %v1667, %v1800
        %v1817 = vsub.f32 %v1670, %v1801
        %v1818 = vsub.f32 %v1673, %v1802
        %v1819 = vsub.f32 %v1676, %v1803
        %v1820 = vsub.f32 %v1679, %v1804
        %v1821 = vsub.f32 %v1682, %v1805
        %v1822 = vsub.f32 %v1685, %v1806
        %v1823 = vsub.f32 %v1688, %v1807
        %v1824 = vsub.f32 %v1691, %v1808
        %v1825 = vsub.f32 %v1694, %v1809
        %v1826 = vsub.f32 %v1697, %v1810
        %v1827 = vmul.f32 %v1778, %v1811
        %v1828 = vmul.f32 %v1779, %v1812
        %v1829 = vmul.f32 %v1780, %v1813
        %v1830 = vmul.f32 %v1781, %v1814
        %v1831 = vmul.f32 %v1782, %v1815
        %v1832 = vmul.f32 %v1783, %v1816
        %v1833 = vmul.f32 %v1784, %v1817
        %v1834 = vmul.f32 %v1785, %v1818
        %v1835 = vmul.f32 %v1786, %v1819
        %v1836 = vmul.f32 %v1787, %v1820
        %v1837 = vmul.f32 %v1788, %v1821
        %v1838 = vmul.f32 %v1789, %v1822
        %v1839 = vmul.f32 %v1790, %v1823
        %v1840 = vmul.f32 %v1791, %v1824
        %v1841 = vmul.f32 %v1792, %v1825
        %v1842 = vmul.f32 %v1793, %v1826
        %1844 = vset.pattern.permute.xlu0 0
        %1845 = vperm.xlu0 %1844, %v389
        %v1846 = vpop.permute.xlu0 %1845
        %v1848 = vlaneseq
        %v1849 = vshrl.u32 %v1848, 7
        %v1850 = vsub.s32 0, %v1849
        %v1851 = vrot.slane %v1846, %v1850
        %v1852 = vadd.f32 %v1827, %v1851
        %v1853 = vadd.f32 %v1828, %v1851
        %v1854 = vadd.f32 %v1829, %v1851
        %v1855 = vadd.f32 %v1830, %v1851
        %v1856 = vadd.f32 %v1831, %v1851
        %v1857 = vadd.f32 %v1832, %v1851
        %v1858 = vadd.f32 %v1833, %v1851
        %v1859 = vadd.f32 %v1834, %v1851
        %v1860 = vadd.f32 %v1835, %v1851
        %v1861 = vadd.f32 %v1836, %v1851
        %v1862 = vadd.f32 %v1837, %v1851
        %v1863 = vadd.f32 %v1838, %v1851
        %v1864 = vadd.f32 %v1839, %v1851
        %v1865 = vadd.f32 %v1840, %v1851
        %v1866 = vadd.f32 %v1841, %v1851
        %v1867 = vadd.f32 %v1842, %v1851
        %v1868 = vld [vmem:[%s372] sm:$0x1]
        %v1870 = vlaneseq
        %v1871 = vshrl.u32 %v1870, 7
        %v1872 = vsub.s32 0, %v1871
        %v1873 = vrot.slane %v1868, %v1872
        %1875 = vbcast.lane.b32.xlu0 %v1873, 256
        %v1876 = vpop.permute.xlu0 %1875
        %s1878 = sor.u32 256, 8
        %1879 = vbcast.lane.b32.xlu0 %v1873, %s1878
        %v1880 = vpop.permute.xlu0 %1879
        %s1882 = sor.u32 256, 16
        %1883 = vbcast.lane.b32.xlu0 %v1873, %s1882
        %v1884 = vpop.permute.xlu0 %1883
        %s1886 = sor.u32 256, 24
        %1887 = vbcast.lane.b32.xlu0 %v1873, %s1886
        %v1888 = vpop.permute.xlu0 %1887
        %s1890 = sor.u32 256, 32
        %1891 = vbcast.lane.b32.xlu0 %v1873, %s1890
        %v1892 = vpop.permute.xlu0 %1891
        %s1894 = sor.u32 256, 40
        %1895 = vbcast.lane.b32.xlu0 %v1873, %s1894
        %v1896 = vpop.permute.xlu0 %1895
        %s1898 = sor.u32 256, 48
        %1899 = vbcast.lane.b32.xlu0 %v1873, %s1898
        %v1900 = vpop.permute.xlu0 %1899
        %s1902 = sor.u32 256, 56
        %1903 = vbcast.lane.b32.xlu0 %v1873, %s1902
        %v1904 = vpop.permute.xlu0 %1903
        %s1906 = sor.u32 256, 64
        %1907 = vbcast.lane.b32.xlu0 %v1873, %s1906
        %v1908 = vpop.permute.xlu0 %1907
        %s1910 = sor.u32 256, 72
        %1911 = vbcast.lane.b32.xlu0 %v1873, %s1910
        %v1912 = vpop.permute.xlu0 %1911
        %s1914 = sor.u32 256, 80
        %1915 = vbcast.lane.b32.xlu0 %v1873, %s1914
        %v1916 = vpop.permute.xlu0 %1915
        %s1918 = sor.u32 256, 88
        %1919 = vbcast.lane.b32.xlu0 %v1873, %s1918
        %v1920 = vpop.permute.xlu0 %1919
        %s1922 = sor.u32 256, 96
        %1923 = vbcast.lane.b32.xlu0 %v1873, %s1922
        %v1924 = vpop.permute.xlu0 %1923
        %s1926 = sor.u32 256, 104
        %1927 = vbcast.lane.b32.xlu0 %v1873, %s1926
        %v1928 = vpop.permute.xlu0 %1927
        %s1930 = sor.u32 256, 112
        %1931 = vbcast.lane.b32.xlu0 %v1873, %s1930
        %v1932 = vpop.permute.xlu0 %1931
        %s1934 = sor.u32 256, 120
        %1935 = vbcast.lane.b32.xlu0 %v1873, %s1934
        %v1936 = vpop.permute.xlu0 %1935
        %v1953 = vmul.f32 %v1852, %v1876
        %v1954 = vmul.f32 %v1853, %v1880
        %v1955 = vmul.f32 %v1854, %v1884
        %v1956 = vmul.f32 %v1855, %v1888
        %v1957 = vmul.f32 %v1856, %v1892
        %v1958 = vmul.f32 %v1857, %v1896
        %v1959 = vmul.f32 %v1858, %v1900
        %v1960 = vmul.f32 %v1859, %v1904
        %v1961 = vmul.f32 %v1860, %v1908
        %v1962 = vmul.f32 %v1861, %v1912
        %v1963 = vmul.f32 %v1862, %v1916
        %v1964 = vmul.f32 %v1863, %v1920
        %v1965 = vmul.f32 %v1864, %v1924
        %v1966 = vmul.f32 %v1865, %v1928
        %v1967 = vmul.f32 %v1866, %v1932
        %v1968 = vmul.f32 %v1867, %v1936
        %1985 = vset.pattern.permute.xlu0 0
        %1986 = vperm.xlu0 %1985, %v1953
        %v1987 = vpop.permute.xlu0 %1986
        %1988 = vset.pattern.permute.xlu0 0
        %1989 = vperm.xlu0 %1988, %v1954
        %v1990 = vpop.permute.xlu0 %1989
        %1991 = vset.pattern.permute.xlu0 0
        %1992 = vperm.xlu0 %1991, %v1955
        %v1993 = vpop.permute.xlu0 %1992
        %1994 = vset.pattern.permute.xlu0 0
        %1995 = vperm.xlu0 %1994, %v1956
        %v1996 = vpop.permute.xlu0 %1995
        %1997 = vset.pattern.permute.xlu0 0
        %1998 = vperm.xlu0 %1997, %v1957
        %v1999 = vpop.permute.xlu0 %1998
        %2000 = vset.pattern.permute.xlu0 0
        %2001 = vperm.xlu0 %2000, %v1958
        %v2002 = vpop.permute.xlu0 %2001
        %2003 = vset.pattern.permute.xlu0 0
        %2004 = vperm.xlu0 %2003, %v1959
        %v2005 = vpop.permute.xlu0 %2004
        %2006 = vset.pattern.permute.xlu0 0
        %2007 = vperm.xlu0 %2006, %v1960
        %v2008 = vpop.permute.xlu0 %2007
        %2009 = vset.pattern.permute.xlu0 0
        %2010 = vperm.xlu0 %2009, %v1961
        %v2011 = vpop.permute.xlu0 %2010
        %2012 = vset.pattern.permute.xlu0 0
        %2013 = vperm.xlu0 %2012, %v1962
        %v2014 = vpop.permute.xlu0 %2013
        %2015 = vset.pattern.permute.xlu0 0
        %2016 = vperm.xlu0 %2015, %v1963
        %v2017 = vpop.permute.xlu0 %2016
        %2018 = vset.pattern.permute.xlu0 0
        %2019 = vperm.xlu0 %2018, %v1964
        %v2020 = vpop.permute.xlu0 %2019
        %2021 = vset.pattern.permute.xlu0 0
        %2022 = vperm.xlu0 %2021, %v1965
        %v2023 = vpop.permute.xlu0 %2022
        %2024 = vset.pattern.permute.xlu0 0
        %2025 = vperm.xlu0 %2024, %v1966
        %v2026 = vpop.permute.xlu0 %2025
        %2027 = vset.pattern.permute.xlu0 0
        %2028 = vperm.xlu0 %2027, %v1967
        %v2029 = vpop.permute.xlu0 %2028
        %2030 = vset.pattern.permute.xlu0 0
        %2031 = vperm.xlu0 %2030, %v1968
        %v2032 = vpop.permute.xlu0 %2031
        %v2033 = vlaneseq
        %v2034 = vand.u32 %v2033, 127
        %v2035 = vlaneseq
        %v2036 = vshrl.u32 %v2035, 7
        %v2037 = vsub.s32 %v2034, %v2036
        %v2038 = vrot.slane %v1987, %v2037
        %v2039 = vadd.s32 %v2034, 4294967288
        %v2040 = vlaneseq
        %v2041 = vshrl.u32 %v2040, 7
        %v2042 = vsub.s32 %v2039, %v2041
        %v2043 = vrot.slane %v1990, %v2042
        %vm2044 = vcmask 130112
        %v2045 = vsel %vm2044, %v2043, %v2038
        %v2046 = vadd.s32 %v2034, 4294967280
        %v2047 = vlaneseq
        %v2048 = vshrl.u32 %v2047, 7
        %v2049 = vsub.s32 %v2046, %v2048
        %v2050 = vrot.slane %v1993, %v2049
        %vm2051 = vcmask 195712
        %v2052 = vsel %vm2051, %v2050, %v2045
        %v2053 = vadd.s32 %v2034, 4294967272
        %v2054 = vlaneseq
        %v2055 = vshrl.u32 %v2054, 7
        %v2056 = vsub.s32 %v2053, %v2055
        %v2057 = vrot.slane %v1996, %v2056
        %vm2058 = vcmask 261312
        %v2059 = vsel %vm2058, %v2057, %v2052
        %v2060 = vadd.s32 %v2034, 4294967264
        %v2061 = vlaneseq
        %v2062 = vshrl.u32 %v2061, 7
        %v2063 = vsub.s32 %v2060, %v2062
        %v2064 = vrot.slane %v1999, %v2063
        %vm2065 = vcmask 326912
        %v2066 = vsel %vm2065, %v2064, %v2059
        %v2067 = vadd.s32 %v2034, 4294967256
        %v2068 = vlaneseq
        %v2069 = vshrl.u32 %v2068, 7
        %v2070 = vsub.s32 %v2067, %v2069
        %v2071 = vrot.slane %v2002, %v2070
        %vm2072 = vcmask 392512
        %v2073 = vsel %vm2072, %v2071, %v2066
        %v2074 = vadd.s32 %v2034, 4294967248
        %v2075 = vlaneseq
        %v2076 = vshrl.u32 %v2075, 7
        %v2077 = vsub.s32 %v2074, %v2076
        %v2078 = vrot.slane %v2005, %v2077
        %vm2079 = vcmask 458112
        %v2080 = vsel %vm2079, %v2078, %v2073
        %v2081 = vadd.s32 %v2034, 4294967240
        %v2082 = vlaneseq
        %v2083 = vshrl.u32 %v2082, 7
        %v2084 = vsub.s32 %v2081, %v2083
        %v2085 = vrot.slane %v2008, %v2084
        %vm2086 = vcmask 523712
        %v2087 = vsel %vm2086, %v2085, %v2080
        %v2088 = vadd.s32 %v2034, 4294967232
        %v2089 = vlaneseq
        %v2090 = vshrl.u32 %v2089, 7
        %v2091 = vsub.s32 %v2088, %v2090
        %v2092 = vrot.slane %v2011, %v2091
        %vm2093 = vcmask 589312
        %v2094 = vsel %vm2093, %v2092, %v2087
        %v2095 = vadd.s32 %v2034, 4294967224
        %v2096 = vlaneseq
        %v2097 = vshrl.u32 %v2096, 7
        %v2098 = vsub.s32 %v2095, %v2097
        %v2099 = vrot.slane %v2014, %v2098
        %vm2100 = vcmask 654912
        %v2101 = vsel %vm2100, %v2099, %v2094
        %v2102 = vadd.s32 %v2034, 4294967216
        %v2103 = vlaneseq
        %v2104 = vshrl.u32 %v2103, 7
        %v2105 = vsub.s32 %v2102, %v2104
        %v2106 = vrot.slane %v2017, %v2105
        %vm2107 = vcmask 720512
        %v2108 = vsel %vm2107, %v2106, %v2101
        %v2109 = vadd.s32 %v2034, 4294967208
        %v2110 = vlaneseq
        %v2111 = vshrl.u32 %v2110, 7
        %v2112 = vsub.s32 %v2109, %v2111
        %v2113 = vrot.slane %v2020, %v2112
        %vm2114 = vcmask 786112
        %v2115 = vsel %vm2114, %v2113, %v2108
        %v2116 = vadd.s32 %v2034, 4294967200
        %v2117 = vlaneseq
        %v2118 = vshrl.u32 %v2117, 7
        %v2119 = vsub.s32 %v2116, %v2118
        %v2120 = vrot.slane %v2023, %v2119
        %vm2121 = vcmask 851712
        %v2122 = vsel %vm2121, %v2120, %v2115
        %v2123 = vadd.s32 %v2034, 4294967192
        %v2124 = vlaneseq
        %v2125 = vshrl.u32 %v2124, 7
        %v2126 = vsub.s32 %v2123, %v2125
        %v2127 = vrot.slane %v2026, %v2126
        %vm2128 = vcmask 917312
        %v2129 = vsel %vm2128, %v2127, %v2122
        %v2130 = vadd.s32 %v2034, 4294967184
        %v2131 = vlaneseq
        %v2132 = vshrl.u32 %v2131, 7
        %v2133 = vsub.s32 %v2130, %v2132
        %v2134 = vrot.slane %v2029, %v2133
        %vm2135 = vcmask 982912
        %v2136 = vsel %vm2135, %v2134, %v2129
        %v2137 = vadd.s32 %v2034, 4294967176
        %v2138 = vlaneseq
        %v2139 = vshrl.u32 %v2138, 7
        %v2140 = vsub.s32 %v2137, %v2139
        %v2141 = vrot.slane %v2032, %v2140
        %vm2142 = vcmask 1048512
        %v2143 = vsel %vm2142, %v2141, %v2136
        %2145 = vst [vmem:[%s364] sm:$0x1] %v2143
        %s2146 = sand.u32 %s254, 1
        %s2147 = scalar_lea.sflag [#allocation4], %s2146
        %s2148 = sand.u32 %s254, 1
        %s2149 = scalar_lea.vmem [#allocation3], %s2148
        // Predicated region
        $region61: #{tpu_custom_call.1} parent=59 // pred_check
          %p2150 = pneg %p264
        $region62: #{tpu_custom_call.1} parent=59 // pred_check_branch
          %2152 = sbr.rel (%p2150) target = $region64
        $region63: #{tpu_custom_call.1} parent=59 // pred_region
          %s2154 = ssub.s32 16, 16
          %2155 = vsyncadd %s2147, %s2154
          %s2156 = smul.addr %s26, 16
          %s2157 = scalar_lea.hbm %s10, %s2156
          %s2159 = sshll.u32 %s2149, 4
          %s2160 = int_to_ptr.vmem [resolvable:$true] %s2159
          %2162 = dma.vmem_to_hbm [thread:$0]  %s2160, 16, %s2157, %s2147
        $region64: #{tpu_custom_call.1} parent=59 // pred_fallthru
          _
      $region60: #{tpu_custom_call.1} parent=5 // pred_fallthru
        _
      %p2163 = scmp.le.s32.totalorder 2, %s21
      // Predicated region
      $region65: #{tpu_custom_call.1} parent=5 // pred_check
        %p2164 = pneg %p2163
      $region66: #{tpu_custom_call.1} parent=5 // pred_check_branch
        %2166 = sbr.rel (%p2164) target = $region68
      $region67: #{tpu_custom_call.1} parent=5 // pred_region
        %s2167 = ssub.s32 %s21, 2
        // Predicated region
        $region69: #{tpu_custom_call.1} parent=67 // pred_check
          %p2168 = pneg %p270
        $region70: #{tpu_custom_call.1} parent=67 // pred_check_branch
          %2170 = sbr.rel (%p2168) target = $region72
        $region71: #{tpu_custom_call.1} parent=67 // pred_region
          %s2171 = sand.u32 %s255, 1
          %s2172 = scalar_lea.sflag [#allocation4], %s2171
          %s2173 = sand.u32 %s255, 1
          %s2174 = scalar_lea.vmem [#allocation3], %s2173
          %2175 = dma.done %s2172, 16
        $region72: #{tpu_custom_call.1} parent=67 // pred_fallthru
          _
      $region68: #{tpu_custom_call.1} parent=5 // pred_fallthru
        _
    $region6: #{tpu_custom_call.1} parent=1 // loop_footer
      %s25 = sadd.s32 1, %s21
    $region7: #{tpu_custom_call.1} parent=1 // loop_footer_branch
      %20 = sbr.rel target = $region3
    $region8: #{tpu_custom_call.1} parent=1 // loop_exit
      _
    %2176 = vsyncpa [#allocation4], 1
    %s2177 = scalar_lea.sflag [#allocation4], 1
    %2178 = vsyncpa %s2177, 1

</llo_original>
